<compile_context>
chip_gen: v6e
topology: v6e:2x2x1
jax: 0.10.0
libtpu: 0.0.40
codegen_flags: <defaults>
</compile_context>

<pallas_src>
import math
import functools

import jax
import jax.numpy as jnp
from jax import lax
from jax.experimental import pallas as pl
from jax.experimental.pallas import tpu as pltpu

# ----------------- scaled-down BERT config (synthetic weights) -----------------
HIDDEN = 32          # stands in for 768
NUM_HEADS = 2
HEAD_DIM = HIDDEN // NUM_HEADS
INTERMEDIATE = 64    # stands in for 3072
NUM_LAYERS = 2       # stands in for 12
VOCAB = 100
MAX_POS = 16
TYPE_VOCAB = 2
NUM_LABELS = 5       # stands in for len(unique_labels)
LABELS_PAD = 128     # classifier output padded to a lane-dense 128
LN_EPS = 1e-12


def _layernorm(x, g, b):
    # f32 statistics; rsqrt goes to the EUP.
    mu = jnp.mean(x, axis=-1, keepdims=True)
    var = jnp.mean(jnp.square(x - mu), axis=-1, keepdims=True)
    return (x - mu) * lax.rsqrt(var + LN_EPS) * g + b


# ----------------------------- fused Pallas kernel -----------------------------
def bert_fused_kernel(x0_hbm, mask_ref, embln_ref,
                      wqkv_ref, bqkv_ref, wo_ref, small_ref,
                      w1_ref, b1_ref, w2_ref,
                      wp_hbm, bp_hbm, wc_hbm, bc_hbm,
                      logits_ref, act_ref,
                      *, batch, seq, num_heads):
    hidden = act_ref.shape[-1]
    bs = batch * seq
    hd = hidden // num_heads

    # ---- grid step 0: DMA the summed embeddings from HBM exactly once and
    #      LayerNorm them into the resident bf16 activation scratch ----
    @pl.when(pl.program_id(0) == 0)
    def _():
        pltpu.sync_copy(x0_hbm, act_ref)
        g = embln_ref[0:1, :]
        b = embln_ref[1:2, :]
        act_ref[...] = _layernorm(act_ref[...].astype(jnp.float32), g, b
                                  ).astype(jnp.bfloat16)

    xb = act_ref[...]                        # (B*S, H) bf16 MXU operand
    x = xb.astype(jnp.float32)               # f32 residual / LN input

    # ---- fused QKV: one (B*S,H)x(H,3H) MXU matmul.  The 1/sqrt(head_dim) scale
    #      is already folded into the Q columns of wqkv/bqkv (done at init). ----
    qkv = jnp.dot(xb, wqkv_ref[0], preferred_element_type=jnp.float32) + bqkv_ref[0]

    # Split heads onto a leading batch axis (row index = h*B + b).  The lane
    # slices are sub-128 only at this toy H=32; at real H=768 they are
    # 128-aligned and free.
    def split_heads(base):
        return jnp.concatenate(
            [qkv[:, base + h * hd: base + (h + 1) * hd].reshape(batch, seq, hd)
             for h in range(num_heads)], axis=0)

    qh = split_heads(0).astype(jnp.bfloat16)             # (nh*B, S, hd)
    kh = split_heads(hidden).astype(jnp.bfloat16)
    vh = split_heads(2 * hidden).astype(jnp.bfloat16)

    # ---- attention: single batched dot_generals over the merged (head, batch)
    #      axis; softmax runs once in f32; additive mask came from the wrapper ----
    s = lax.dot_general(qh, kh, (((2,), (2,)), ((0,), (0,))),
                        preferred_element_type=jnp.float32)         # (nh*B, S, S)
    s = s + mask_ref[...]
    s = s - jnp.max(s, axis=-1, keepdims=True)
    e = jnp.exp(s)
    p = e * pl.reciprocal(jnp.sum(e, axis=-1, keepdims=True), approx=True)
    ctx = lax.dot_general(p.astype(jnp.bfloat16), vh,
                          (((2,), (1,)), ((0,), (0,))),
                          preferred_element_type=jnp.float32)        # (nh*B, S, hd)

    # concat heads back onto the lane axis and run ONE full (H,H) output proj
    ctx = jnp.concatenate(
        [ctx[h * batch:(h + 1) * batch] for h in range(num_heads)],
        axis=-1).reshape(bs, hidden)                                  # (B*S, H)

    sm = small_ref[0]                        # (6, H): bo, ln1_g, ln1_b, b2, ln2_g, ln2_b
    bo, ln1g, ln1b = sm[0:1, :], sm[1:2, :], sm[2:3, :]
    b2, ln2g, ln2b = sm[3:4, :], sm[4:5, :], sm[5:6, :]

    attn = jnp.dot(ctx.astype(jnp.bfloat16), wo_ref[0],
                   preferred_element_type=jnp.float32) + bo
    h1 = _layernorm(x + attn, ln1g, ln1b)

    # ---- feed-forward (bf16 MXU matmuls, f32 GELU) ----
    f = jnp.dot(h1.astype(jnp.bfloat16), w1_ref[0],
                preferred_element_type=jnp.float32) + b1_ref[0]
    # TODO(synk): HF BERT uses erf-based GELU; tanh approximation kept for robust
    # Mosaic lowering (small numeric difference vs. the PyTorch reference).
    f = jax.nn.gelu(f, approximate=True)
    f = jnp.dot(f.astype(jnp.bfloat16), w2_ref[0],
                preferred_element_type=jnp.float32) + b2
    out = _layernorm(h1 + f, ln2g, ln2b)
    act_ref[...] = out.astype(jnp.bfloat16)   # bf16 carried activation

    # ---- last layer: pooler([CLS]) -> dropout (identity, eval) -> classifier.
    #      Pooler/classifier weights stay in HBM (pl.ANY) and are fetched only
    #      here, so they never occupy resident VMEM across the layer loop. ----
    @pl.when(pl.program_id(0) == pl.num_programs(0) - 1)
    def _():
        # single strided CLS extraction (token 0 of every sequence), not a
        # per-row slice + concatenate
        cls = out.reshape(batch, seq, hidden)[:, 0:1, :].reshape(batch, hidden)

        def pooler_classifier(wp_v, bp_v, wc_v, bc_v):
            pltpu.sync_copy(wp_hbm, wp_v)
            pltpu.sync_copy(bp_hbm, bp_v)
            pltpu.sync_copy(wc_hbm, wc_v)
            pltpu.sync_copy(bc_hbm, bc_v)
            pooled = jnp.tanh(
                jnp.dot(cls.astype(jnp.bfloat16), wp_v[...],
                        preferred_element_type=jnp.float32) + bp_v[...])
            # Dropout(p=0.5) is an identity at inference time.
            logits_ref[...] = (
                jnp.dot(pooled.astype(jnp.bfloat16), wc_v[...],
                        preferred_element_type=jnp.float32) + bc_v[...])

        pl.run_scoped(pooler_classifier,
                      pltpu.VMEM((hidden, hidden), jnp.bfloat16),
                      pltpu.VMEM((1, hidden), jnp.float32),
                      pltpu.VMEM((hidden, LABELS_PAD), jnp.bfloat16),
                      pltpu.VMEM((1, LABELS_PAD), jnp.float32))


# ----------------------------- wrapper -----------------------------
def bert_class_forward(params, ids, mask, token_type_ids):
    """Equivalent of BERTClass.forward(ids, mask, token_type_ids) -> logits."""
    B, S = ids.shape
    H, I, L, NH = HIDDEN, INTERMEDIATE, NUM_LAYERS, NUM_HEADS

    # Embedding gathers + sum in plain JAX (the (S,H) position-embedding broadcast
    # is fused by XLA, never materialized as (B,S,H) in HBM).  Cast to bf16 to
    # match the bf16 resident activation (halves the one-time DMA).
    we = jnp.take(params["word_emb"], ids, axis=0)                  # (B,S,H)
    te = jnp.take(params["type_emb"], token_type_ids, axis=0)       # (B,S,H)
    pe = params["pos_emb"][:S]                                      # (S,H)
    x0 = (we + pe[None, :, :] + te).reshape(B * S, H).astype(jnp.bfloat16)

    # Additive attention mask hoisted out of the kernel, tiled h-major to match
    # the kernel's (head, batch)-merged score batch axis.
    neg = (1.0 - mask.astype(jnp.float32)).reshape(B, 1, S) * (-10000.0)
    neg = jnp.tile(neg, (NH, 1, 1))                                  # (NH*B, 1, S)

    def const(shape):
        return pl.BlockSpec(shape, lambda l: (0,) * len(shape))

    def per_layer(shape):
        return pl.BlockSpec((1,) + shape, lambda l: (l, 0, 0))

    hbm = pl.BlockSpec(memory_space=pl.ANY)

    kernel = functools.partial(bert_fused_kernel, batch=B, seq=S, num_heads=NH)

    logits_pad = pl.pallas_call(
        kernel,
        out_shape=jax.ShapeDtypeStruct((B, LABELS_PAD), jnp.float32),
        grid=(L,),
        in_specs=[
            hbm,                                   # x0 (HBM, read once at step 0)
            const((NH * B, 1, S)),                 # additive attention mask
            const((2, H)),                         # embedding LN gamma/beta
            per_layer((H, 3 * H)),                 # fused Wqkv (scale folded in)
            per_layer((1, 3 * H)),                 # fused bqkv
            per_layer((H, H)),                     # Wo
            per_layer((6, H)),                     # packed small per-layer params
            per_layer((H, I)),                     # FFN W1
            per_layer((1, I)),                     # FFN b1
            per_layer((I, H)),                     # FFN W2
            hbm, hbm, hbm, hbm,                    # pooler W/b, classifier W/b
        ],
        out_specs=pl.BlockSpec((B, LABELS_PAD), lambda l: (0, 0)),
        scratch_shapes=[pltpu.VMEM((B * S, H), jnp.bfloat16)],       # resident act
        compiler_params=pltpu.CompilerParams(
            dimension_semantics=("arbitrary",),    # layer axis carries state
            vmem_limit_bytes=48 * 1024 * 1024),    # headroom on v7x's 64 MiB
    )(x0, neg, params["emb_ln"],
      params["wqkv"], params["bqkv"], params["wo"], params["small"],
      params["w1"], params["b1"], params["w2"],
      params["pooler_w"], params["pooler_b"],
      params["cls_w_pad"], params["cls_b_pad"])

    return logits_pad[:, :NUM_LABELS]


# ----------------------------- synthetic params -----------------------------
def init_params(key):
    # TODO(synk): pretrained 'Maltehb/danish-bert-botxo' weights / tokenizer are
    # not loadable in-script; synthetic scaled-down weights are used instead.
    def norm(k, shape, std=0.02):
        return std * jax.random.normal(k, shape, dtype=jnp.float32)

    keys = iter(jax.random.split(key, 24))
    L, H, I, NH = NUM_LAYERS, HIDDEN, INTERMEDIATE, NUM_HEADS
    bf16 = jnp.bfloat16
    scale = 1.0 / math.sqrt(H // NH)

    wq = norm(next(keys), (L, H, H)); bq = jnp.zeros((L, 1, H), jnp.float32)
    wk = norm(next(keys), (L, H, H)); bk = jnp.zeros((L, 1, H), jnp.float32)
    wv = norm(next(keys), (L, H, H)); bv = jnp.zeros((L, 1, H), jnp.float32)

    cls_w = norm(next(keys), (H, NUM_LABELS))        # torch Linear(768, L).weight.T
    cls_w_pad = jnp.zeros((H, LABELS_PAD), jnp.float32).at[:, :NUM_LABELS].set(cls_w)

    params = dict(
        word_emb=norm(next(keys), (VOCAB, H)),
        pos_emb=norm(next(keys), (MAX_POS, H)),
        type_emb=norm(next(keys), (TYPE_VOCAB, H)),
        emb_ln=jnp.concatenate([jnp.ones((1, H), jnp.float32),
                                jnp.zeros((1, H), jnp.float32)], axis=0),
        # fused QKV, 1/sqrt(head_dim) folded into the Q columns/bias (free at init)
        wqkv=jnp.concatenate([wq * scale, wk, wv], axis=-1).astype(bf16),
        bqkv=jnp.concatenate([bq * scale, bk, bv], axis=-1),
        wo=norm(next(keys), (L, H, H)).astype(bf16),
        # packed small per-layer params: [bo, ln1_g, ln1_b, b2, ln2_g, ln2_b]
        small=jnp.concatenate([
            jnp.zeros((L, 1, H), jnp.float32),     # bo
            jnp.ones((L, 1, H), jnp.float32),      # ln1 gamma
            jnp.zeros((L, 1, H), jnp.float32),     # ln1 beta
            jnp.zeros((L, 1, H), jnp.float32),     # b2
            jnp.ones((L, 1, H), jnp.float32),      # ln2 gamma
            jnp.zeros((L, 1, H), jnp.float32),     # ln2 beta
        ], axis=1),
        w1=norm(next(keys), (L, H, I)).astype(bf16),
        b1=jnp.zeros((L, 1, I), jnp.float32),
        w2=norm(next(keys), (L, I, H)).astype(bf16),
        pooler_w=norm(next(keys), (H, H)).astype(bf16),
        pooler_b=jnp.zeros((1, H), jnp.float32),
        cls_w_pad=cls_w_pad.astype(bf16),
        cls_b_pad=jnp.zeros((1, LABELS_PAD), jnp.float32),
    )
    return params


if __name__ == "__main__":
    key = jax.random.PRNGKey(0)
    pkey, ikey = jax.random.split(key)
    params = init_params(pkey)

    B, S = 2, 8
    ids = jax.random.randint(ikey, (B, S), 0, VOCAB, dtype=jnp.int32)
    mask = jnp.array([[1, 1, 1, 1, 1, 1, 1, 1],
                      [1, 1, 1, 1, 1, 1, 0, 0]], dtype=jnp.int32)
    token_type_ids = jnp.zeros((B, S), dtype=jnp.int32)

    forward = jax.jit(bert_class_forward)
    logits = forward(params, ids, mask, token_type_ids)
    logits = jax.block_until_ready(logits)
    assert logits.shape == (B, NUM_LABELS)
    assert bool(jnp.all(jnp.isfinite(logits)))
    print("KERNEL_OK")
</pallas_src>

<mosaic_0001>
module attributes {stable_mosaic.version = 11 : i64} {
  func.func @bert_fused_kernel(%arg0: i32, %arg1: memref<16x32xbf16, #tpu.memory_space<any>>, %arg2: memref<4x1x8xf32, #tpu.memory_space<vmem>>, %arg3: memref<2x32xf32, #tpu.memory_space<vmem>>, %arg4: memref<1x32x96xbf16, #tpu.memory_space<vmem>>, %arg5: memref<1x1x96xf32, #tpu.memory_space<vmem>>, %arg6: memref<1x32x32xbf16, #tpu.memory_space<vmem>>, %arg7: memref<1x6x32xf32, #tpu.memory_space<vmem>>, %arg8: memref<1x32x64xbf16, #tpu.memory_space<vmem>>, %arg9: memref<1x1x64xf32, #tpu.memory_space<vmem>>, %arg10: memref<1x64x32xbf16, #tpu.memory_space<vmem>>, %arg11: memref<32x32xbf16, #tpu.memory_space<any>>, %arg12: memref<1x32xf32, #tpu.memory_space<any>>, %arg13: memref<32x128xbf16, #tpu.memory_space<any>>, %arg14: memref<1x128xf32, #tpu.memory_space<any>>, %arg15: memref<2x128xf32, #tpu.memory_space<vmem>>, %arg16: memref<16x32xbf16, #tpu.memory_space<vmem>>) attributes {dimension_semantics = [#tpu.dimension_semantics<arbitrary>], iteration_bounds = array<i64: 2>, scalar_prefetch = 0 : i64, scratch_operands = 1 : i64, tpu.core_type = #tpu.core_type<tc>, window_params = [{}, {pipeline_mode = #tpu.pipeline_mode<synchronous>, transform_indices = @transform_1, window_bounds = array<i64: 4, 1, 8>}, {pipeline_mode = #tpu.pipeline_mode<synchronous>, transform_indices = @transform_2, window_bounds = array<i64: 2, 32>}, {transform_indices = @transform_3, window_bounds = array<i64: 1, 32, 96>}, {transform_indices = @transform_4, window_bounds = array<i64: 1, 1, 96>}, {transform_indices = @transform_5, window_bounds = array<i64: 1, 32, 32>}, {transform_indices = @transform_6, window_bounds = array<i64: 1, 6, 32>}, {transform_indices = @transform_7, window_bounds = array<i64: 1, 32, 64>}, {transform_indices = @transform_8, window_bounds = array<i64: 1, 1, 64>}, {transform_indices = @transform_9, window_bounds = array<i64: 1, 64, 32>}, {}, {}, {}, {}, {pipeline_mode = #tpu.pipeline_mode<synchronous>, transform_indices = @transform_14, window_bounds = array<i64: 2, 128>}]} {
    %c0_i32 = arith.constant 0 : i32
    %0 = arith.cmpi eq, %arg0, %c0_i32 : i32
    %1 = arith.extui %0 : i1 to i32
    %c0_i32_0 = arith.constant 0 : i32
    %2 = arith.cmpi ne, %1, %c0_i32_0 : i32
    scf.if %2 {
      "tpu.region"() ({
        %170 = tpu.sem_alloc : memref<!tpu.dma_semaphore, #tpu.memory_space<semaphore_mem>>
        tpu.enqueue_dma source(%arg1 : memref<16x32xbf16, #tpu.memory_space<any>>) target(%arg16 : memref<16x32xbf16, #tpu.memory_space<vmem>>) target_semaphore(%170 : memref<!tpu.dma_semaphore, #tpu.memory_space<semaphore_mem>>)
        tpu.wait_dma2 semaphore(%170 : memref<!tpu.dma_semaphore, #tpu.memory_space<semaphore_mem>>) src(%arg1 : memref<16x32xbf16, #tpu.memory_space<any>>) dst(%arg16 : memref<16x32xbf16, #tpu.memory_space<vmem>>)
        tpu.yield
      }) : () -> ()
      %c0_50 = arith.constant 0 : index
      %c0_51 = arith.constant 0 : index
      %142 = vector.load %arg3[%c0_50, %c0_51] : memref<2x32xf32, #tpu.memory_space<vmem>>, vector<1x32xf32>
      %c1 = arith.constant 1 : index
      %c0_52 = arith.constant 0 : index
      %143 = vector.load %arg3[%c1, %c0_52] : memref<2x32xf32, #tpu.memory_space<vmem>>, vector<1x32xf32>
      %c0_53 = arith.constant 0 : index
      %c0_54 = arith.constant 0 : index
      %144 = vector.load %arg16[%c0_53, %c0_54] : memref<16x32xbf16, #tpu.memory_space<vmem>>, vector<16x32xbf16>
      %145 = arith.extf %144 : vector<16x32xbf16> to vector<16x32xf32>
      %cst_55 = arith.constant dense<0.000000e+00> : vector<16xf32>
      %146 = vector.multi_reduction <add>, %145, %cst_55 [1] : vector<16x32xf32> to vector<16xf32>
      %147 = vector.shape_cast %146 : vector<16xf32> to vector<16x1xf32>
      %cst_56 = arith.constant 3.200000e+01 : f32
      %148 = vector.broadcast %cst_56 : f32 to vector<16x1xf32>
      %149 = arith.divf %147, %148 : vector<16x1xf32>
      %150 = vector.broadcast %149 : vector<16x1xf32> to vector<16x32xf32>
      %151 = arith.subf %145, %150 : vector<16x32xf32>
      %152 = arith.mulf %151, %151 : vector<16x32xf32>
      %cst_57 = arith.constant dense<0.000000e+00> : vector<16xf32>
      %153 = vector.multi_reduction <add>, %152, %cst_57 [1] : vector<16x32xf32> to vector<16xf32>
      %154 = vector.shape_cast %153 : vector<16xf32> to vector<16x1xf32>
      %cst_58 = arith.constant 3.200000e+01 : f32
      %155 = vector.broadcast %cst_58 : f32 to vector<16x1xf32>
      %156 = arith.divf %154, %155 : vector<16x1xf32>
      %157 = vector.broadcast %149 : vector<16x1xf32> to vector<16x32xf32>
      %158 = arith.subf %145, %157 : vector<16x32xf32>
      %cst_59 = arith.constant 9.99999996E-13 : f32
      %159 = vector.broadcast %cst_59 : f32 to vector<16x1xf32>
      %160 = arith.addf %156, %159 : vector<16x1xf32>
      %161 = math.rsqrt %160 : vector<16x1xf32>
      %162 = vector.broadcast %161 : vector<16x1xf32> to vector<16x32xf32>
      %163 = arith.mulf %158, %162 : vector<16x32xf32>
      %164 = vector.broadcast %142 : vector<1x32xf32> to vector<16x32xf32>
      %165 = arith.mulf %163, %164 : vector<16x32xf32>
      %166 = vector.broadcast %143 : vector<1x32xf32> to vector<16x32xf32>
      %167 = arith.addf %165, %166 : vector<16x32xf32>
      %168 = arith.truncf %167 : vector<16x32xf32> to vector<16x32xbf16>
      %c0_60 = arith.constant 0 : index
      %c0_61 = arith.constant 0 : index
      %169 = vector.load %arg16[%c0_60, %c0_61] : memref<16x32xbf16, #tpu.memory_space<vmem>>, vector<16x32xbf16>
      tpu.vector_store %arg16[%c0_60, %c0_61], %168 {strides = array<i32>} : memref<16x32xbf16, #tpu.memory_space<vmem>>, vector<16x32xbf16>,
    } else {
    }
    %c0 = arith.constant 0 : index
    %c0_1 = arith.constant 0 : index
    %3 = vector.load %arg16[%c0, %c0_1] : memref<16x32xbf16, #tpu.memory_space<vmem>>, vector<16x32xbf16>
    %4 = arith.extf %3 : vector<16x32xbf16> to vector<16x32xf32>
    %c0_2 = arith.constant 0 : index
    %c0_3 = arith.constant 0 : index
    %c0_4 = arith.constant 0 : index
    %5 = vector.load %arg4[%c0_2, %c0_3, %c0_4] : memref<1x32x96xbf16, #tpu.memory_space<vmem>>, vector<1x32x96xbf16>
    %6 = vector.shape_cast %5 : vector<1x32x96xbf16> to vector<32x96xbf16>
    %cst = arith.constant dense<0.000000e+00> : vector<16x96xf32>
    %7 = tpu.matmul %3, %6, %cst {dimension_numbers = #tpu.dot_dimension_numbers<[1], [0], [0], [1], [0, 0, 1, 1], [], []>} : vector<16x32xbf16>, vector<32x96xbf16>, vector<16x96xf32> -> vector<16x96xf32>
    %c0_5 = arith.constant 0 : index
    %c0_6 = arith.constant 0 : index
    %c0_7 = arith.constant 0 : index
    %8 = vector.load %arg5[%c0_5, %c0_6, %c0_7] : memref<1x1x96xf32, #tpu.memory_space<vmem>>, vector<1x1x96xf32>
    %9 = vector.shape_cast %8 : vector<1x1x96xf32> to vector<1x96xf32>
    %10 = vector.broadcast %9 : vector<1x96xf32> to vector<16x96xf32>
    %11 = arith.addf %7, %10 : vector<16x96xf32>
    %12 = vector.extract_strided_slice %11 {offsets = [0, 0], sizes = [16, 16], strides = [1, 1]} : vector<16x96xf32> to vector<16x16xf32>
    %13 = vector.shape_cast %12 : vector<16x16xf32> to vector<2x8x16xf32>
    %14 = vector.extract_strided_slice %11 {offsets = [0, 16], sizes = [16, 16], strides = [1, 1]} : vector<16x96xf32> to vector<16x16xf32>
    %15 = vector.shape_cast %14 : vector<16x16xf32> to vector<2x8x16xf32>
    %16 = tpu.concatenate %13, %15 in 0 : vector<2x8x16xf32>, vector<2x8x16xf32> -> vector<4x8x16xf32>
    %17 = arith.truncf %16 : vector<4x8x16xf32> to vector<4x8x16xbf16>
    %18 = vector.extract_strided_slice %11 {offsets = [0, 32], sizes = [16, 16], strides = [1, 1]} : vector<16x96xf32> to vector<16x16xf32>
    %19 = vector.shape_cast %18 : vector<16x16xf32> to vector<2x8x16xf32>
    %20 = vector.extract_strided_slice %11 {offsets = [0, 48], sizes = [16, 16], strides = [1, 1]} : vector<16x96xf32> to vector<16x16xf32>
    %21 = vector.shape_cast %20 : vector<16x16xf32> to vector<2x8x16xf32>
    %22 = tpu.concatenate %19, %21 in 0 : vector<2x8x16xf32>, vector<2x8x16xf32> -> vector<4x8x16xf32>
    %23 = arith.truncf %22 : vector<4x8x16xf32> to vector<4x8x16xbf16>
    %24 = vector.extract_strided_slice %11 {offsets = [0, 64], sizes = [16, 16], strides = [1, 1]} : vector<16x96xf32> to vector<16x16xf32>
    %25 = vector.shape_cast %24 : vector<16x16xf32> to vector<2x8x16xf32>
    %26 = vector.extract_strided_slice %11 {offsets = [0, 80], sizes = [16, 16], strides = [1, 1]} : vector<16x96xf32> to vector<16x16xf32>
    %27 = vector.shape_cast %26 : vector<16x16xf32> to vector<2x8x16xf32>
    %28 = tpu.concatenate %25, %27 in 0 : vector<2x8x16xf32>, vector<2x8x16xf32> -> vector<4x8x16xf32>
    %29 = arith.truncf %28 : vector<4x8x16xf32> to vector<4x8x16xbf16>
    %cst_8 = arith.constant dense<0.000000e+00> : vector<4x8x8xf32>
    %30 = tpu.matmul %17, %23, %cst_8 {dimension_numbers = #tpu.dot_dimension_numbers<[2], [2], [1], [1], [0, 0, 0, 1, 1, 1], [0], [0]>} : vector<4x8x16xbf16>, vector<4x8x16xbf16>, vector<4x8x8xf32> -> vector<4x8x8xf32>
    %c0_9 = arith.constant 0 : index
    %c0_10 = arith.constant 0 : index
    %c0_11 = arith.constant 0 : index
    %31 = vector.load %arg2[%c0_9, %c0_10, %c0_11] : memref<4x1x8xf32, #tpu.memory_space<vmem>>, vector<4x1x8xf32>
    %32 = vector.broadcast %31 : vector<4x1x8xf32> to vector<4x8x8xf32>
    %33 = arith.addf %30, %32 : vector<4x8x8xf32>
    %cst_12 = arith.constant dense<0xFF800000> : vector<4x8xf32>
    %34 = vector.multi_reduction <maximumf>, %33, %cst_12 [2] : vector<4x8x8xf32> to vector<4x8xf32>
    %35 = vector.shape_cast %34 : vector<4x8xf32> to vector<4x8x1xf32>
    %36 = vector.broadcast %35 : vector<4x8x1xf32> to vector<4x8x8xf32>
    %37 = arith.subf %33, %36 : vector<4x8x8xf32>
    %38 = math.exp %37 : vector<4x8x8xf32>
    %cst_13 = arith.constant dense<0.000000e+00> : vector<4x8xf32>
    %39 = vector.multi_reduction <add>, %38, %cst_13 [2] : vector<4x8x8xf32> to vector<4x8xf32>
    %40 = vector.shape_cast %39 : vector<4x8xf32> to vector<4x8x1xf32>
    %41 = tpu.reciprocal %40 {approx = true} : vector<4x8x1xf32> -> vector<4x8x1xf32>
    %42 = vector.broadcast %41 : vector<4x8x1xf32> to vector<4x8x8xf32>
    %43 = arith.mulf %38, %42 : vector<4x8x8xf32>
    %44 = arith.truncf %43 : vector<4x8x8xf32> to vector<4x8x8xbf16>
    %cst_14 = arith.constant dense<0.000000e+00> : vector<4x8x16xf32>
    %45 = tpu.matmul %44, %29, %cst_14 {dimension_numbers = #tpu.dot_dimension_numbers<[2], [1], [1], [2], [0, 0, 0, 1, 1, 2], [0], [0]>} : vector<4x8x8xbf16>, vector<4x8x16xbf16>, vector<4x8x16xf32> -> vector<4x8x16xf32>
    %46 = vector.extract_strided_slice %45 {offsets = [0, 0, 0], sizes = [2, 8, 16], strides = [1, 1, 1]} : vector<4x8x16xf32> to vector<2x8x16xf32>
    %47 = vector.extract_strided_slice %45 {offsets = [2, 0, 0], sizes = [2, 8, 16], strides = [1, 1, 1]} : vector<4x8x16xf32> to vector<2x8x16xf32>
    %48 = tpu.concatenate %46, %47 in 2 : vector<2x8x16xf32>, vector<2x8x16xf32> -> vector<2x8x32xf32>
    %49 = vector.shape_cast %48 : vector<2x8x32xf32> to vector<16x32xf32>
    %c0_15 = arith.constant 0 : index
    %c0_16 = arith.constant 0 : index
    %c0_17 = arith.constant 0 : index
    %50 = vector.load %arg7[%c0_15, %c0_16, %c0_17] : memref<1x6x32xf32, #tpu.memory_space<vmem>>, vector<1x6x32xf32>
    %51 = vector.shape_cast %50 : vector<1x6x32xf32> to vector<6x32xf32>
    %52 = vector.extract_strided_slice %51 {offsets = [0, 0], sizes = [1, 32], strides = [1, 1]} : vector<6x32xf32> to vector<1x32xf32>
    %53 = vector.extract_strided_slice %51 {offsets = [1, 0], sizes = [1, 32], strides = [1, 1]} : vector<6x32xf32> to vector<1x32xf32>
    %54 = vector.extract_strided_slice %51 {offsets = [2, 0], sizes = [1, 32], strides = [1, 1]} : vector<6x32xf32> to vector<1x32xf32>
    %55 = vector.extract_strided_slice %51 {offsets = [3, 0], sizes = [1, 32], strides = [1, 1]} : vector<6x32xf32> to vector<1x32xf32>
    %56 = vector.extract_strided_slice %51 {offsets = [4, 0], sizes = [1, 32], strides = [1, 1]} : vector<6x32xf32> to vector<1x32xf32>
    %57 = vector.extract_strided_slice %51 {offsets = [5, 0], sizes = [1, 32], strides = [1, 1]} : vector<6x32xf32> to vector<1x32xf32>
    %58 = arith.truncf %49 : vector<16x32xf32> to vector<16x32xbf16>
    %c0_18 = arith.constant 0 : index
    %c0_19 = arith.constant 0 : index
    %c0_20 = arith.constant 0 : index
    %59 = vector.load %arg6[%c0_18, %c0_19, %c0_20] : memref<1x32x32xbf16, #tpu.memory_space<vmem>>, vector<1x32x32xbf16>
    %60 = vector.shape_cast %59 : vector<1x32x32xbf16> to vector<32x32xbf16>
    %cst_21 = arith.constant dense<0.000000e+00> : vector<16x32xf32>
    %61 = tpu.matmul %58, %60, %cst_21 {dimension_numbers = #tpu.dot_dimension_numbers<[1], [0], [0], [1], [0, 0, 1, 1], [], []>} : vector<16x32xbf16>, vector<32x32xbf16>, vector<16x32xf32> -> vector<16x32xf32>
    %62 = vector.broadcast %52 : vector<1x32xf32> to vector<16x32xf32>
    %63 = arith.addf %61, %62 : vector<16x32xf32>
    %64 = arith.addf %4, %63 : vector<16x32xf32>
    %cst_22 = arith.constant dense<0.000000e+00> : vector<16xf32>
    %65 = vector.multi_reduction <add>, %64, %cst_22 [1] : vector<16x32xf32> to vector<16xf32>
    %66 = vector.shape_cast %65 : vector<16xf32> to vector<16x1xf32>
    %cst_23 = arith.constant 3.200000e+01 : f32
    %67 = vector.broadcast %cst_23 : f32 to vector<16x1xf32>
    %68 = arith.divf %66, %67 : vector<16x1xf32>
    %69 = vector.broadcast %68 : vector<16x1xf32> to vector<16x32xf32>
    %70 = arith.subf %64, %69 : vector<16x32xf32>
    %71 = arith.mulf %70, %70 : vector<16x32xf32>
    %cst_24 = arith.constant dense<0.000000e+00> : vector<16xf32>
    %72 = vector.multi_reduction <add>, %71, %cst_24 [1] : vector<16x32xf32> to vector<16xf32>
    %73 = vector.shape_cast %72 : vector<16xf32> to vector<16x1xf32>
    %cst_25 = arith.constant 3.200000e+01 : f32
    %74 = vector.broadcast %cst_25 : f32 to vector<16x1xf32>
    %75 = arith.divf %73, %74 : vector<16x1xf32>
    %76 = vector.broadcast %68 : vector<16x1xf32> to vector<16x32xf32>
    %77 = arith.subf %64, %76 : vector<16x32xf32>
    %cst_26 = arith.constant 9.99999996E-13 : f32
    %78 = vector.broadcast %cst_26 : f32 to vector<16x1xf32>
    %79 = arith.addf %75, %78 : vector<16x1xf32>
    %80 = math.rsqrt %79 : vector<16x1xf32>
    %81 = vector.broadcast %80 : vector<16x1xf32> to vector<16x32xf32>
    %82 = arith.mulf %77, %81 : vector<16x32xf32>
    %83 = vector.broadcast %53 : vector<1x32xf32> to vector<16x32xf32>
    %84 = arith.mulf %82, %83 : vector<16x32xf32>
    %85 = vector.broadcast %54 : vector<1x32xf32> to vector<16x32xf32>
    %86 = arith.addf %84, %85 : vector<16x32xf32>
    %87 = arith.truncf %86 : vector<16x32xf32> to vector<16x32xbf16>
    %c0_27 = arith.constant 0 : index
    %c0_28 = arith.constant 0 : index
    %c0_29 = arith.constant 0 : index
    %88 = vector.load %arg8[%c0_27, %c0_28, %c0_29] : memref<1x32x64xbf16, #tpu.memory_space<vmem>>, vector<1x32x64xbf16>
    %89 = vector.shape_cast %88 : vector<1x32x64xbf16> to vector<32x64xbf16>
    %cst_30 = arith.constant dense<0.000000e+00> : vector<16x64xf32>
    %90 = tpu.matmul %87, %89, %cst_30 {dimension_numbers = #tpu.dot_dimension_numbers<[1], [0], [0], [1], [0, 0, 1, 1], [], []>} : vector<16x32xbf16>, vector<32x64xbf16>, vector<16x64xf32> -> vector<16x64xf32>
    %c0_31 = arith.constant 0 : index
    %c0_32 = arith.constant 0 : index
    %c0_33 = arith.constant 0 : index
    %91 = vector.load %arg9[%c0_31, %c0_32, %c0_33] : memref<1x1x64xf32, #tpu.memory_space<vmem>>, vector<1x1x64xf32>
    %92 = vector.shape_cast %91 : vector<1x1x64xf32> to vector<1x64xf32>
    %93 = vector.broadcast %92 : vector<1x64xf32> to vector<16x64xf32>
    %94 = arith.addf %90, %93 : vector<16x64xf32>
    %95 = arith.mulf %94, %94 : vector<16x64xf32>
    %96 = arith.mulf %94, %95 : vector<16x64xf32>
    %cst_34 = arith.constant 4.471500e-02 : f32
    %97 = vector.broadcast %cst_34 : f32 to vector<16x64xf32>
    %98 = arith.mulf %97, %96 : vector<16x64xf32>
    %99 = arith.addf %94, %98 : vector<16x64xf32>
    %cst_35 = arith.constant 0.797884583 : f32
    %100 = vector.broadcast %cst_35 : f32 to vector<16x64xf32>
    %101 = arith.mulf %100, %99 : vector<16x64xf32>
    %102 = math.tanh %101 : vector<16x64xf32>
    %cst_36 = arith.constant 1.000000e+00 : f32
    %103 = vector.broadcast %cst_36 : f32 to vector<16x64xf32>
    %104 = arith.addf %103, %102 : vector<16x64xf32>
    %cst_37 = arith.constant 5.000000e-01 : f32
    %105 = vector.broadcast %cst_37 : f32 to vector<16x64xf32>
    %106 = arith.mulf %105, %104 : vector<16x64xf32>
    %107 = arith.mulf %94, %106 : vector<16x64xf32>
    %108 = arith.truncf %107 : vector<16x64xf32> to vector<16x64xbf16>
    %c0_38 = arith.constant 0 : index
    %c0_39 = arith.constant 0 : index
    %c0_40 = arith.constant 0 : index
    %109 = vector.load %arg10[%c0_38, %c0_39, %c0_40] : memref<1x64x32xbf16, #tpu.memory_space<vmem>>, vector<1x64x32xbf16>
    %110 = vector.shape_cast %109 : vector<1x64x32xbf16> to vector<64x32xbf16>
    %cst_41 = arith.constant dense<0.000000e+00> : vector<16x32xf32>
    %111 = tpu.matmul %108, %110, %cst_41 {dimension_numbers = #tpu.dot_dimension_numbers<[1], [0], [0], [1], [0, 0, 1, 1], [], []>} : vector<16x64xbf16>, vector<64x32xbf16>, vector<16x32xf32> -> vector<16x32xf32>
    %112 = vector.broadcast %55 : vector<1x32xf32> to vector<16x32xf32>
    %113 = arith.addf %111, %112 : vector<16x32xf32>
    %114 = arith.addf %86, %113 : vector<16x32xf32>
    %cst_42 = arith.constant dense<0.000000e+00> : vector<16xf32>
    %115 = vector.multi_reduction <add>, %114, %cst_42 [1] : vector<16x32xf32> to vector<16xf32>
    %116 = vector.shape_cast %115 : vector<16xf32> to vector<16x1xf32>
    %cst_43 = arith.constant 3.200000e+01 : f32
    %117 = vector.broadcast %cst_43 : f32 to vector<16x1xf32>
    %118 = arith.divf %116, %117 : vector<16x1xf32>
    %119 = vector.broadcast %118 : vector<16x1xf32> to vector<16x32xf32>
    %120 = arith.subf %114, %119 : vector<16x32xf32>
    %121 = arith.mulf %120, %120 : vector<16x32xf32>
    %cst_44 = arith.constant dense<0.000000e+00> : vector<16xf32>
    %122 = vector.multi_reduction <add>, %121, %cst_44 [1] : vector<16x32xf32> to vector<16xf32>
    %123 = vector.shape_cast %122 : vector<16xf32> to vector<16x1xf32>
    %cst_45 = arith.constant 3.200000e+01 : f32
    %124 = vector.broadcast %cst_45 : f32 to vector<16x1xf32>
    %125 = arith.divf %123, %124 : vector<16x1xf32>
    %126 = vector.broadcast %118 : vector<16x1xf32> to vector<16x32xf32>
    %127 = arith.subf %114, %126 : vector<16x32xf32>
    %cst_46 = arith.constant 9.99999996E-13 : f32
    %128 = vector.broadcast %cst_46 : f32 to vector<16x1xf32>
    %129 = arith.addf %125, %128 : vector<16x1xf32>
    %130 = math.rsqrt %129 : vector<16x1xf32>
    %131 = vector.broadcast %130 : vector<16x1xf32> to vector<16x32xf32>
    %132 = arith.mulf %127, %131 : vector<16x32xf32>
    %133 = vector.broadcast %56 : vector<1x32xf32> to vector<16x32xf32>
    %134 = arith.mulf %132, %133 : vector<16x32xf32>
    %135 = vector.broadcast %57 : vector<1x32xf32> to vector<16x32xf32>
    %136 = arith.addf %134, %135 : vector<16x32xf32>
    %137 = arith.truncf %136 : vector<16x32xf32> to vector<16x32xbf16>
    %c0_47 = arith.constant 0 : index
    %c0_48 = arith.constant 0 : index
    %138 = vector.load %arg16[%c0_47, %c0_48] : memref<16x32xbf16, #tpu.memory_space<vmem>>, vector<16x32xbf16>
    tpu.vector_store %arg16[%c0_47, %c0_48], %137 {strides = array<i32>} : memref<16x32xbf16, #tpu.memory_space<vmem>>, vector<16x32xbf16>,
    %c1_i32 = arith.constant 1 : i32
    %139 = arith.cmpi eq, %arg0, %c1_i32 : i32
    %140 = arith.extui %139 : i1 to i32
    %c0_i32_49 = arith.constant 0 : i32
    %141 = arith.cmpi ne, %140, %c0_i32_49 : i32
    scf.if %141 {
      %142 = vector.shape_cast %136 : vector<16x32xf32> to vector<2x8x32xf32>
      %143 = vector.extract_strided_slice %142 {offsets = [0, 0, 0], sizes = [2, 1, 32], strides = [1, 1, 1]} : vector<2x8x32xf32> to vector<2x1x32xf32>
      %144 = vector.shape_cast %143 : vector<2x1x32xf32> to vector<2x32xf32>
      "tpu.region"() ({
        %alloca = memref.alloca() : memref<32x32xbf16, #tpu.memory_space<vmem>>
        %alloca_50 = memref.alloca() : memref<1x32xf32, #tpu.memory_space<vmem>>
        %alloca_51 = memref.alloca() : memref<32x128xbf16, #tpu.memory_space<vmem>>
        %alloca_52 = memref.alloca() : memref<1x128xf32, #tpu.memory_space<vmem>>
        "tpu.region"() ({
          %159 = tpu.sem_alloc : memref<!tpu.dma_semaphore, #tpu.memory_space<semaphore_mem>>
          tpu.enqueue_dma source(%arg11 : memref<32x32xbf16, #tpu.memory_space<any>>) target(%alloca : memref<32x32xbf16, #tpu.memory_space<vmem>>) target_semaphore(%159 : memref<!tpu.dma_semaphore, #tpu.memory_space<semaphore_mem>>)
          tpu.wait_dma2 semaphore(%159 : memref<!tpu.dma_semaphore, #tpu.memory_space<semaphore_mem>>) src(%arg11 : memref<32x32xbf16, #tpu.memory_space<any>>) dst(%alloca : memref<32x32xbf16, #tpu.memory_space<vmem>>)
          tpu.yield
        }) : () -> ()
        "tpu.region"() ({
          %159 = tpu.sem_alloc : memref<!tpu.dma_semaphore, #tpu.memory_space<semaphore_mem>>
          tpu.enqueue_dma source(%arg12 : memref<1x32xf32, #tpu.memory_space<any>>) target(%alloca_50 : memref<1x32xf32, #tpu.memory_space<vmem>>) target_semaphore(%159 : memref<!tpu.dma_semaphore, #tpu.memory_space<semaphore_mem>>)
          tpu.wait_dma2 semaphore(%159 : memref<!tpu.dma_semaphore, #tpu.memory_space<semaphore_mem>>) src(%arg12 : memref<1x32xf32, #tpu.memory_space<any>>) dst(%alloca_50 : memref<1x32xf32, #tpu.memory_space<vmem>>)
          tpu.yield
        }) : () -> ()
        "tpu.region"() ({
          %159 = tpu.sem_alloc : memref<!tpu.dma_semaphore, #tpu.memory_space<semaphore_mem>>
          tpu.enqueue_dma source(%arg13 : memref<32x128xbf16, #tpu.memory_space<any>>) target(%alloca_51 : memref<32x128xbf16, #tpu.memory_space<vmem>>) target_semaphore(%159 : memref<!tpu.dma_semaphore, #tpu.memory_space<semaphore_mem>>)
          tpu.wait_dma2 semaphore(%159 : memref<!tpu.dma_semaphore, #tpu.memory_space<semaphore_mem>>) src(%arg13 : memref<32x128xbf16, #tpu.memory_space<any>>) dst(%alloca_51 : memref<32x128xbf16, #tpu.memory_space<vmem>>)
          tpu.yield
        }) : () -> ()
        "tpu.region"() ({
          %159 = tpu.sem_alloc : memref<!tpu.dma_semaphore, #tpu.memory_space<semaphore_mem>>
          tpu.enqueue_dma source(%arg14 : memref<1x128xf32, #tpu.memory_space<any>>) target(%alloca_52 : memref<1x128xf32, #tpu.memory_space<vmem>>) target_semaphore(%159 : memref<!tpu.dma_semaphore, #tpu.memory_space<semaphore_mem>>)
          tpu.wait_dma2 semaphore(%159 : memref<!tpu.dma_semaphore, #tpu.memory_space<semaphore_mem>>) src(%arg14 : memref<1x128xf32, #tpu.memory_space<any>>) dst(%alloca_52 : memref<1x128xf32, #tpu.memory_space<vmem>>)
          tpu.yield
        }) : () -> ()
        %145 = arith.truncf %144 : vector<2x32xf32> to vector<2x32xbf16>
        %c0_53 = arith.constant 0 : index
        %c0_54 = arith.constant 0 : index
        %146 = vector.load %alloca[%c0_53, %c0_54] : memref<32x32xbf16, #tpu.memory_space<vmem>>, vector<32x32xbf16>
        %cst_55 = arith.constant dense<0.000000e+00> : vector<2x32xf32>
        %147 = tpu.matmul %145, %146, %cst_55 {dimension_numbers = #tpu.dot_dimension_numbers<[1], [0], [0], [1], [0, 0, 1, 1], [], []>} : vector<2x32xbf16>, vector<32x32xbf16>, vector<2x32xf32> -> vector<2x32xf32>
        %c0_56 = arith.constant 0 : index
        %c0_57 = arith.constant 0 : index
        %148 = vector.load %alloca_50[%c0_56, %c0_57] : memref<1x32xf32, #tpu.memory_space<vmem>>, vector<1x32xf32>
        %149 = vector.broadcast %148 : vector<1x32xf32> to vector<2x32xf32>
        %150 = arith.addf %147, %149 : vector<2x32xf32>
        %151 = math.tanh %150 : vector<2x32xf32>
        %152 = arith.truncf %151 : vector<2x32xf32> to vector<2x32xbf16>
        %c0_58 = arith.constant 0 : index
        %c0_59 = arith.constant 0 : index
        %153 = vector.load %alloca_51[%c0_58, %c0_59] : memref<32x128xbf16, #tpu.memory_space<vmem>>, vector<32x128xbf16>
        %cst_60 = arith.constant dense<0.000000e+00> : vector<2x128xf32>
        %154 = tpu.matmul %152, %153, %cst_60 {dimension_numbers = #tpu.dot_dimension_numbers<[1], [0], [0], [1], [0, 0, 1, 1], [], []>} : vector<2x32xbf16>, vector<32x128xbf16>, vector<2x128xf32> -> vector<2x128xf32>
        %c0_61 = arith.constant 0 : index
        %c0_62 = arith.constant 0 : index
        %155 = vector.load %alloca_52[%c0_61, %c0_62] : memref<1x128xf32, #tpu.memory_space<vmem>>, vector<1x128xf32>
        %156 = vector.broadcast %155 : vector<1x128xf32> to vector<2x128xf32>
        %157 = arith.addf %154, %156 : vector<2x128xf32>
        %c0_63 = arith.constant 0 : index
        %c0_64 = arith.constant 0 : index
        %158 = vector.load %arg15[%c0_63, %c0_64] : memref<2x128xf32, #tpu.memory_space<vmem>>, vector<2x128xf32>
        tpu.vector_store %arg15[%c0_63, %c0_64], %157 {strides = array<i32>} : memref<2x128xf32, #tpu.memory_space<vmem>>, vector<2x128xf32>,
        tpu.yield
      }) : () -> ()
    } else {
    }
    return
  }
  func.func @transform_1(%arg0: i32) -> (i32, i32, i32) {
    %c0_i32 = arith.constant 0 : i32
    %c0_i32_0 = arith.constant 0 : i32
    %c0_i32_1 = arith.constant 0 : i32
    %c0_i32_2 = arith.constant 0 : i32
    return %c0_i32, %c0_i32_0, %c0_i32_1 : i32, i32, i32
  }
  func.func @transform_2(%arg0: i32) -> (i32, i32) {
    %c0_i32 = arith.constant 0 : i32
    %c0_i32_0 = arith.constant 0 : i32
    %c0_i32_1 = arith.constant 0 : i32
    return %c0_i32, %c0_i32_0 : i32, i32
  }
  func.func @transform_3(%arg0: i32) -> (i32, i32, i32) {
    %c0_i32 = arith.constant 0 : i32
    %c0_i32_0 = arith.constant 0 : i32
    %c0_i32_1 = arith.constant 0 : i32
    return %arg0, %c0_i32, %c0_i32_0 : i32, i32, i32
  }
  func.func @transform_4(%arg0: i32) -> (i32, i32, i32) {
    %c0_i32 = arith.constant 0 : i32
    %c0_i32_0 = arith.constant 0 : i32
    %c0_i32_1 = arith.constant 0 : i32
    return %arg0, %c0_i32, %c0_i32_0 : i32, i32, i32
  }
  func.func @transform_5(%arg0: i32) -> (i32, i32, i32) {
    %c0_i32 = arith.constant 0 : i32
    %c0_i32_0 = arith.constant 0 : i32
    %c0_i32_1 = arith.constant 0 : i32
    return %arg0, %c0_i32, %c0_i32_0 : i32, i32, i32
  }
  func.func @transform_6(%arg0: i32) -> (i32, i32, i32) {
    %c0_i32 = arith.constant 0 : i32
    %c0_i32_0 = arith.constant 0 : i32
    %c0_i32_1 = arith.constant 0 : i32
    return %arg0, %c0_i32, %c0_i32_0 : i32, i32, i32
  }
  func.func @transform_7(%arg0: i32) -> (i32, i32, i32) {
    %c0_i32 = arith.constant 0 : i32
    %c0_i32_0 = arith.constant 0 : i32
    %c0_i32_1 = arith.constant 0 : i32
    return %arg0, %c0_i32, %c0_i32_0 : i32, i32, i32
  }
  func.func @transform_8(%arg0: i32) -> (i32, i32, i32) {
    %c0_i32 = arith.constant 0 : i32
    %c0_i32_0 = arith.constant 0 : i32
    %c0_i32_1 = arith.constant 0 : i32
    return %arg0, %c0_i32, %c0_i32_0 : i32, i32, i32
  }
  func.func @transform_9(%arg0: i32) -> (i32, i32, i32) {
    %c0_i32 = arith.constant 0 : i32
    %c0_i32_0 = arith.constant 0 : i32
    %c0_i32_1 = arith.constant 0 : i32
    return %arg0, %c0_i32, %c0_i32_0 : i32, i32, i32
  }
  func.func @transform_14(%arg0: i32) -> (i32, i32) {
    %c0_i32 = arith.constant 0 : i32
    %c0_i32_0 = arith.constant 0 : i32
    %c0_i32_1 = arith.constant 0 : i32
    return %c0_i32, %c0_i32_0 : i32, i32
  }
}

</mosaic_0001>

<llo_original>
// kernel: bert_class_forward.1
$region0: #{bert_class_forward.1}
  #allocation0 [shape = 'u32[]', space=smem, size = 0x4, offset = 0x4, fixed_abs, tag = 'smem constant byte address 0x4 - core index']
  #allocation1 [shape = 'u32[144,128]{1,0:T(1,128)}', space=vmem, size = 0x12000, scoped, tag = 'internal scratch']
  #allocation2 [shape = 'bf16[16,32]{1,0:T(8,128)(2,1)}', space=vmem, size = 0x1000, scoped, tag = 'scratch operand']
  #allocation6 [shape = 's32[]', space=sflag, size = 0x4, offset = 0, fixed_abs, tag = 'sflag constant byte address 0x0 - dummy sync flag']
  #allocation12 [shape = 's32[]', space=sflag, size = 0x4, offset = 0, fixed_abs, tag = 'sflag constant byte address 0x0 - dummy sync flag']
  #allocation14 [shape = 's32[]', space=sflag, size = 0x4, offset = 0, fixed_abs, tag = 'sflag constant byte address 0x0 - dummy sync flag']
  #allocation16 [shape = 's32[]', space=sflag, size = 0x4, offset = 0, fixed_abs, tag = 'sflag constant byte address 0x0 - dummy sync flag']
  #allocation18 [shape = 's32[]', space=sflag, size = 0x4, offset = 0, fixed_abs, tag = 'sflag constant byte address 0x0 - dummy sync flag']
  %s0 = inlined_call_operand.vmem [shape: bf16[16,32], index: 0, kind: input, shape index: {}]
  %s1 = inlined_call_operand.vmem [shape: f32[4,1,8], index: 1, kind: input, shape index: {}]
  %s2 = inlined_call_operand.vmem [shape: f32[2,32], index: 2, kind: input, shape index: {}]
  %s3 = inlined_call_operand.vmem [shape: bf16[2,32,96], index: 3, kind: input, shape index: {}]
  %s4 = inlined_call_operand.vmem [shape: f32[2,1,96], index: 4, kind: input, shape index: {}]
  %s5 = inlined_call_operand.vmem [shape: bf16[2,32,32], index: 5, kind: input, shape index: {}]
  %s6 = inlined_call_operand.vmem [shape: f32[2,6,32], index: 6, kind: input, shape index: {}]
  %s7 = inlined_call_operand.vmem [shape: bf16[2,32,64], index: 7, kind: input, shape index: {}]
  %s8 = inlined_call_operand.vmem [shape: f32[2,1,64], index: 8, kind: input, shape index: {}]
  %s9 = inlined_call_operand.vmem [shape: bf16[2,64,32], index: 9, kind: input, shape index: {}]
  %s10 = inlined_call_operand.vmem [shape: bf16[32,32], index: 10, kind: input, shape index: {}]
  %s11 = inlined_call_operand.vmem [shape: f32[1,32], index: 11, kind: input, shape index: {}]
  %s12 = inlined_call_operand.vmem [shape: bf16[32,128], index: 12, kind: input, shape index: {}]
  %s13 = inlined_call_operand.vmem [shape: f32[1,128], index: 13, kind: input, shape index: {}]
  %s14 = inlined_call_operand.hbm [shape: f32[2,128], index: 14, kind: output, shape index: {}]
  %s15 = sld [smem:[#allocation0]]
  $region245: #{bert_class_forward.1} parent=0
    _
  %s17 = ssub.s32 1, %s15
  %s18 = scalar_select 0, %s17, %s15
  $region1: #{bert_class_forward.1} parent=0
    #allocation3 [shape = 'u8[1024]{0}', space=vmem, size = 0x400, scoped, tag = 'output window, operand 0, single buffered']
    #allocation4 [shape = 's32[2]{0}', space=sflag, size = 0x8, scoped, tag = 'scoped memory for bert_class_forward.1']
    %19 = vsyncpa [#allocation4], 0
    loop: start=0, step=1, limit=4
    $region2: #{bert_class_forward.1} parent=1 // loop_pre_header
      _
    $region3: #{bert_class_forward.1} parent=1 // loop_header
      %s21 = sphi 0, %s25
      %p22 = scmp.ge.s32.totalorder %s21, 4
      %s29 = sphi 0, %s29
      %s31 = sphi 0, %s29
      %s32 = sphi 0, %s31
      %s46 = sphi 0, %s32
      %s50 = sphi 0, %s50
      %s52 = sphi 0, %s50
      %s53 = sphi 0, %s52
      %s67 = sphi 0, %s53
      %s73 = sphi 0, %s75
      %s76 = sphi 0, %s73
      %s77 = sphi 0, %s76
      %s93 = sphi 0, %s77
      %s99 = sphi 0, %s101
      %s102 = sphi 0, %s99
      %s103 = sphi 0, %s102
      %s119 = sphi 0, %s103
      %s125 = sphi 0, %s127
      %s128 = sphi 0, %s125
      %s129 = sphi 0, %s128
      %s145 = sphi 0, %s129
      %s151 = sphi 0, %s153
      %s154 = sphi 0, %s151
      %s155 = sphi 0, %s154
      %s171 = sphi 0, %s155
      %s177 = sphi 0, %s179
      %s180 = sphi 0, %s177
      %s181 = sphi 0, %s180
      %s197 = sphi 0, %s181
      %s203 = sphi 0, %s205
      %s206 = sphi 0, %s203
      %s207 = sphi 0, %s206
      %s223 = sphi 0, %s207
      %s229 = sphi 0, %s231
      %s232 = sphi 0, %s229
      %s233 = sphi 0, %s232
      %s249 = sphi 0, %s233
      %s253 = sphi 0, %s253
      %s255 = sphi 0, %s253
      %s256 = sphi 0, %s255
      %s270 = sphi 0, %s256
    $region4: #{bert_class_forward.1} parent=1 // loop_header_branch
      %24 = sbr.rel (%p22) target = $region8
    $region5: #{bert_class_forward.1} parent=1 // loop_body
      %s26 = ssub.s32 %s21, 1
      %s27 = ssub.s32 %s21, 2
      %s28 = sadd.s32 %s21, 1
      %s30 = sadd.s32 %s29, 1
      %p33 = scmp.eq.s32.totalorder %s21, 1
      %p34 = scmp.ne.s32.totalorder %s29, %s31
      %p35 = scmp.eq.s32.totalorder %s21, 0
      %p36 = por %p34, %p35
      %p37 = scmp.ne.s32.totalorder %s29, %s31
      %p38 = scmp.eq.s32.totalorder %s26, 1
      %p39 = por %p37, %p38
      %p40 = scmp.ne.s32.totalorder %s31, %s32
      %p41 = scmp.eq.s32.totalorder %s26, 0
      %p42 = por %p40, %p41
      %p43 = scmp.ne.s32.totalorder %s31, %s32
      %p44 = scmp.eq.s32.totalorder %s27, 1
      %p45 = por %p43, %p44
      %p47 = scmp.ne.s32.totalorder %s32, %s46
      %p48 = scmp.eq.s32.totalorder %s27, 0
      %p49 = por %p47, %p48
      %s51 = sadd.s32 %s50, 1
      %p54 = scmp.eq.s32.totalorder %s21, 1
      %p55 = scmp.ne.s32.totalorder %s50, %s52
      %p56 = scmp.eq.s32.totalorder %s21, 0
      %p57 = por %p55, %p56
      %p58 = scmp.ne.s32.totalorder %s50, %s52
      %p59 = scmp.eq.s32.totalorder %s26, 1
      %p60 = por %p58, %p59
      %p61 = scmp.ne.s32.totalorder %s52, %s53
      %p62 = scmp.eq.s32.totalorder %s26, 0
      %p63 = por %p61, %p62
      %p64 = scmp.ne.s32.totalorder %s52, %s53
      %p65 = scmp.eq.s32.totalorder %s27, 1
      %p66 = por %p64, %p65
      %p68 = scmp.ne.s32.totalorder %s53, %s67
      %p69 = scmp.eq.s32.totalorder %s27, 0
      %p70 = por %p68, %p69
      %s71 = ssub.s32 %s21, %s28
      %p72 = scmp.eq.s32.totalorder %s71, 0
      %s74 = sadd.s32 %s73, 1
      %s75 = scalar_select %p72, %s73, %s74
      %p78 = pneg %p72
      %p79 = scmp.eq.s32.totalorder %s21, 1
      %p80 = por %p78, %p79
      %p81 = scmp.ne.s32.totalorder %s73, %s76
      %p82 = scmp.eq.s32.totalorder %s21, 0
      %p83 = por %p81, %p82
      %p84 = scmp.ne.s32.totalorder %s73, %s76
      %p85 = scmp.eq.s32.totalorder %s26, 1
      %p86 = por %p84, %p85
      %p87 = scmp.ne.s32.totalorder %s76, %s77
      %p88 = scmp.eq.s32.totalorder %s26, 0
      %p89 = por %p87, %p88
      %p90 = scmp.ne.s32.totalorder %s76, %s77
      %p91 = scmp.eq.s32.totalorder %s27, 1
      %p92 = por %p90, %p91
      %p94 = scmp.ne.s32.totalorder %s77, %s93
      %p95 = scmp.eq.s32.totalorder %s27, 0
      %p96 = por %p94, %p95
      %s97 = ssub.s32 %s21, %s28
      %p98 = scmp.eq.s32.totalorder %s97, 0
      %s100 = sadd.s32 %s99, 1
      %s101 = scalar_select %p98, %s99, %s100
      %p104 = pneg %p98
      %p105 = scmp.eq.s32.totalorder %s21, 1
      %p106 = por %p104, %p105
      %p107 = scmp.ne.s32.totalorder %s99, %s102
      %p108 = scmp.eq.s32.totalorder %s21, 0
      %p109 = por %p107, %p108
      %p110 = scmp.ne.s32.totalorder %s99, %s102
      %p111 = scmp.eq.s32.totalorder %s26, 1
      %p112 = por %p110, %p111
      %p113 = scmp.ne.s32.totalorder %s102, %s103
      %p114 = scmp.eq.s32.totalorder %s26, 0
      %p115 = por %p113, %p114
      %p116 = scmp.ne.s32.totalorder %s102, %s103
      %p117 = scmp.eq.s32.totalorder %s27, 1
      %p118 = por %p116, %p117
      %p120 = scmp.ne.s32.totalorder %s103, %s119
      %p121 = scmp.eq.s32.totalorder %s27, 0
      %p122 = por %p120, %p121
      %s123 = ssub.s32 %s21, %s28
      %p124 = scmp.eq.s32.totalorder %s123, 0
      %s126 = sadd.s32 %s125, 1
      %s127 = scalar_select %p124, %s125, %s126
      %p130 = pneg %p124
      %p131 = scmp.eq.s32.totalorder %s21, 1
      %p132 = por %p130, %p131
      %p133 = scmp.ne.s32.totalorder %s125, %s128
      %p134 = scmp.eq.s32.totalorder %s21, 0
      %p135 = por %p133, %p134
      %p136 = scmp.ne.s32.totalorder %s125, %s128
      %p137 = scmp.eq.s32.totalorder %s26, 1
      %p138 = por %p136, %p137
      %p139 = scmp.ne.s32.totalorder %s128, %s129
      %p140 = scmp.eq.s32.totalorder %s26, 0
      %p141 = por %p139, %p140
      %p142 = scmp.ne.s32.totalorder %s128, %s129
      %p143 = scmp.eq.s32.totalorder %s27, 1
      %p144 = por %p142, %p143
      %p146 = scmp.ne.s32.totalorder %s129, %s145
      %p147 = scmp.eq.s32.totalorder %s27, 0
      %p148 = por %p146, %p147
      %s149 = ssub.s32 %s21, %s28
      %p150 = scmp.eq.s32.totalorder %s149, 0
      %s152 = sadd.s32 %s151, 1
      %s153 = scalar_select %p150, %s151, %s152
      %p156 = pneg %p150
      %p157 = scmp.eq.s32.totalorder %s21, 1
      %p158 = por %p156, %p157
      %p159 = scmp.ne.s32.totalorder %s151, %s154
      %p160 = scmp.eq.s32.totalorder %s21, 0
      %p161 = por %p159, %p160
      %p162 = scmp.ne.s32.totalorder %s151, %s154
      %p163 = scmp.eq.s32.totalorder %s26, 1
      %p164 = por %p162, %p163
      %p165 = scmp.ne.s32.totalorder %s154, %s155
      %p166 = scmp.eq.s32.totalorder %s26, 0
      %p167 = por %p165, %p166
      %p168 = scmp.ne.s32.totalorder %s154, %s155
      %p169 = scmp.eq.s32.totalorder %s27, 1
      %p170 = por %p168, %p169
      %p172 = scmp.ne.s32.totalorder %s155, %s171
      %p173 = scmp.eq.s32.totalorder %s27, 0
      %p174 = por %p172, %p173
      %s175 = ssub.s32 %s21, %s28
      %p176 = scmp.eq.s32.totalorder %s175, 0
      %s178 = sadd.s32 %s177, 1
      %s179 = scalar_select %p176, %s177, %s178
      %p182 = pneg %p176
      %p183 = scmp.eq.s32.totalorder %s21, 1
      %p184 = por %p182, %p183
      %p185 = scmp.ne.s32.totalorder %s177, %s180
      %p186 = scmp.eq.s32.totalorder %s21, 0
      %p187 = por %p185, %p186
      %p188 = scmp.ne.s32.totalorder %s177, %s180
      %p189 = scmp.eq.s32.totalorder %s26, 1
      %p190 = por %p188, %p189
      %p191 = scmp.ne.s32.totalorder %s180, %s181
      %p192 = scmp.eq.s32.totalorder %s26, 0
      %p193 = por %p191, %p192
      %p194 = scmp.ne.s32.totalorder %s180, %s181
      %p195 = scmp.eq.s32.totalorder %s27, 1
      %p196 = por %p194, %p195
      %p198 = scmp.ne.s32.totalorder %s181, %s197
      %p199 = scmp.eq.s32.totalorder %s27, 0
      %p200 = por %p198, %p199
      %s201 = ssub.s32 %s21, %s28
      %p202 = scmp.eq.s32.totalorder %s201, 0
      %s204 = sadd.s32 %s203, 1
      %s205 = scalar_select %p202, %s203, %s204
      %p208 = pneg %p202
      %p209 = scmp.eq.s32.totalorder %s21, 1
      %p210 = por %p208, %p209
      %p211 = scmp.ne.s32.totalorder %s203, %s206
      %p212 = scmp.eq.s32.totalorder %s21, 0
      %p213 = por %p211, %p212
      %p214 = scmp.ne.s32.totalorder %s203, %s206
      %p215 = scmp.eq.s32.totalorder %s26, 1
      %p216 = por %p214, %p215
      %p217 = scmp.ne.s32.totalorder %s206, %s207
      %p218 = scmp.eq.s32.totalorder %s26, 0
      %p219 = por %p217, %p218
      %p220 = scmp.ne.s32.totalorder %s206, %s207
      %p221 = scmp.eq.s32.totalorder %s27, 1
      %p222 = por %p220, %p221
      %p224 = scmp.ne.s32.totalorder %s207, %s223
      %p225 = scmp.eq.s32.totalorder %s27, 0
      %p226 = por %p224, %p225
      %s227 = ssub.s32 %s21, %s28
      %p228 = scmp.eq.s32.totalorder %s227, 0
      %s230 = sadd.s32 %s229, 1
      %s231 = scalar_select %p228, %s229, %s230
      %p234 = pneg %p228
      %p235 = scmp.eq.s32.totalorder %s21, 1
      %p236 = por %p234, %p235
      %p237 = scmp.ne.s32.totalorder %s229, %s232
      %p238 = scmp.eq.s32.totalorder %s21, 0
      %p239 = por %p237, %p238
      %p240 = scmp.ne.s32.totalorder %s229, %s232
      %p241 = scmp.eq.s32.totalorder %s26, 1
      %p242 = por %p240, %p241
      %p243 = scmp.ne.s32.totalorder %s232, %s233
      %p244 = scmp.eq.s32.totalorder %s26, 0
      %p245 = por %p243, %p244
      %p246 = scmp.ne.s32.totalorder %s232, %s233
      %p247 = scmp.eq.s32.totalorder %s27, 1
      %p248 = por %p246, %p247
      %p250 = scmp.ne.s32.totalorder %s233, %s249
      %p251 = scmp.eq.s32.totalorder %s27, 0
      %p252 = por %p250, %p251
      %s254 = sadd.s32 %s253, 1
      %p257 = scmp.eq.s32.totalorder %s21, 1
      %p258 = scmp.ne.s32.totalorder %s253, %s255
      %p259 = scmp.eq.s32.totalorder %s21, 0
      %p260 = por %p258, %p259
      %p261 = scmp.ne.s32.totalorder %s253, %s255
      %p262 = scmp.eq.s32.totalorder %s26, 1
      %p263 = por %p261, %p262
      %p264 = scmp.ne.s32.totalorder %s255, %s256
      %p265 = scmp.eq.s32.totalorder %s26, 0
      %p266 = por %p264, %p265
      %p267 = scmp.ne.s32.totalorder %s255, %s256
      %p268 = scmp.eq.s32.totalorder %s27, 1
      %p269 = por %p267, %p268
      %p271 = scmp.ne.s32.totalorder %s256, %s270
      %p272 = scmp.eq.s32.totalorder %s27, 0
      %p273 = por %p271, %p272
      %p274 = scmp.le.s32.totalorder 1, %s21
      %p275 = scmp.lt.s32.totalorder %s21, 3
      %p276 = pnand %p274, %p275
      %p277 = pneg %p276
      // Predicated region
      $region9: #{bert_class_forward.1} parent=5 // pred_check
        _
      $region10: #{bert_class_forward.1} parent=5 // pred_check_branch
        %279 = sbr.rel (%p276) target = $region12
      $region11: #{bert_class_forward.1} parent=5 // pred_region
        %s280 = ssub.s32 %s21, 1
        // Predicated region
        $region13: #{bert_class_forward.1} parent=11 // pred_check
          %p281 = pneg %p42
        $region14: #{bert_class_forward.1} parent=11 // pred_check_branch
          %283 = sbr.rel (%p281) target = $region16
        $region15: #{bert_class_forward.1} parent=11 // pred_region
          _
        $region16: #{bert_class_forward.1} parent=11 // pred_fallthru
          _
        // Predicated region
        $region17: #{bert_class_forward.1} parent=11 // pred_check
          %p284 = pneg %p63
        $region18: #{bert_class_forward.1} parent=11 // pred_check_branch
          %286 = sbr.rel (%p284) target = $region20
        $region19: #{bert_class_forward.1} parent=11 // pred_region
          _
        $region20: #{bert_class_forward.1} parent=11 // pred_fallthru
          _
      $region12: #{bert_class_forward.1} parent=5 // pred_fallthru
        _
      %p287 = scmp.lt.s32.totalorder %s21, 2
      // Predicated region
      $region21: #{bert_class_forward.1} parent=5 // pred_check
        %p288 = pneg %p287
      $region22: #{bert_class_forward.1} parent=5 // pred_check_branch
        %290 = sbr.rel (%p288) target = $region24
      $region23: #{bert_class_forward.1} parent=5 // pred_region
        // Predicated region
        $region25: #{bert_class_forward.1} parent=23 // pred_check
          %p291 = pneg %p83
        $region26: #{bert_class_forward.1} parent=23 // pred_check_branch
          %293 = sbr.rel (%p291) target = $region28
        $region27: #{bert_class_forward.1} parent=23 // pred_region
          %p294 = scmp.lt.s32.totalorder %s21, 1
          %s295 = scalar_select %p294, %s21, 1
          %s296 = smul.addr %s295, 4
          %s297 = smul.addr %s296, 4
          %s298 = scalar_lea.vmem %s3, %s297
        $region28: #{bert_class_forward.1} parent=23 // pred_fallthru
          _
        // Predicated region
        $region29: #{bert_class_forward.1} parent=23 // pred_check
          %p299 = pneg %p109
        $region30: #{bert_class_forward.1} parent=23 // pred_check_branch
          %301 = sbr.rel (%p299) target = $region32
        $region31: #{bert_class_forward.1} parent=23 // pred_region
          %p302 = scmp.lt.s32.totalorder %s21, 1
          %s303 = scalar_select %p302, %s21, 1
          %s304 = scalar_lea.vmem %s4, %s303
        $region32: #{bert_class_forward.1} parent=23 // pred_fallthru
          _
        // Predicated region
        $region33: #{bert_class_forward.1} parent=23 // pred_check
          %p305 = pneg %p135
        $region34: #{bert_class_forward.1} parent=23 // pred_check_branch
          %307 = sbr.rel (%p305) target = $region36
        $region35: #{bert_class_forward.1} parent=23 // pred_region
          %p308 = scmp.lt.s32.totalorder %s21, 1
          %s309 = scalar_select %p308, %s21, 1
          %s310 = smul.addr %s309, 4
          %s311 = smul.addr %s310, 4
          %s312 = scalar_lea.vmem %s5, %s311
        $region36: #{bert_class_forward.1} parent=23 // pred_fallthru
          _
        // Predicated region
        $region37: #{bert_class_forward.1} parent=23 // pred_check
          %p313 = pneg %p161
        $region38: #{bert_class_forward.1} parent=23 // pred_check_branch
          %315 = sbr.rel (%p313) target = $region40
        $region39: #{bert_class_forward.1} parent=23 // pred_region
          %p316 = scmp.lt.s32.totalorder %s21, 1
          %s317 = scalar_select %p316, %s21, 1
          %s318 = smul.addr %s317, 8
          %s319 = scalar_lea.vmem %s6, %s318
        $region40: #{bert_class_forward.1} parent=23 // pred_fallthru
          _
        // Predicated region
        $region41: #{bert_class_forward.1} parent=23 // pred_check
          %p320 = pneg %p187
        $region42: #{bert_class_forward.1} parent=23 // pred_check_branch
          %322 = sbr.rel (%p320) target = $region44
        $region43: #{bert_class_forward.1} parent=23 // pred_region
          %p323 = scmp.lt.s32.totalorder %s21, 1
          %s324 = scalar_select %p323, %s21, 1
          %s325 = smul.addr %s324, 4
          %s326 = smul.addr %s325, 4
          %s327 = scalar_lea.vmem %s7, %s326
        $region44: #{bert_class_forward.1} parent=23 // pred_fallthru
          _
        // Predicated region
        $region45: #{bert_class_forward.1} parent=23 // pred_check
          %p328 = pneg %p213
        $region46: #{bert_class_forward.1} parent=23 // pred_check_branch
          %330 = sbr.rel (%p328) target = $region48
        $region47: #{bert_class_forward.1} parent=23 // pred_region
          %p331 = scmp.lt.s32.totalorder %s21, 1
          %s332 = scalar_select %p331, %s21, 1
          %s333 = scalar_lea.vmem %s8, %s332
        $region48: #{bert_class_forward.1} parent=23 // pred_fallthru
          _
        // Predicated region
        $region49: #{bert_class_forward.1} parent=23 // pred_check
          %p334 = pneg %p239
        $region50: #{bert_class_forward.1} parent=23 // pred_check_branch
          %336 = sbr.rel (%p334) target = $region52
        $region51: #{bert_class_forward.1} parent=23 // pred_region
          %p337 = scmp.lt.s32.totalorder %s21, 1
          %s338 = scalar_select %p337, %s21, 1
          %s339 = smul.addr %s338, 8
          %s340 = smul.addr %s339, 4
          %s341 = scalar_lea.vmem %s9, %s340
        $region52: #{bert_class_forward.1} parent=23 // pred_fallthru
          _
      $region24: #{bert_class_forward.1} parent=5 // pred_fallthru
        _
      %p342 = scmp.le.s32.totalorder 1, %s21
      %p343 = scmp.lt.s32.totalorder %s21, 3
      %p344 = pnand %p342, %p343
      %p345 = pneg %p344
      // Predicated region
      $region53: #{bert_class_forward.1} parent=5 // pred_check
        _
      $region54: #{bert_class_forward.1} parent=5 // pred_check_branch
        %347 = sbr.rel (%p344) target = $region56
      $region55: #{bert_class_forward.1} parent=5 // pred_region
        %s348 = ssub.s32 %s21, 1
        %p349 = pneg %p42
        %p350 = pneg %p39
        %p351 = pneg %p63
        %p352 = pneg %p60
        %p353 = scmp.lt.s32.totalorder %s26, 1
        %s354 = scalar_select %p353, %s26, 1
        %s355 = smul.addr %s354, 4
        %s356 = smul.addr %s355, 4
        %s357 = scalar_lea.vmem %s3, %s356
        %p358 = pneg %p89
        %p359 = pneg %p86
        %p360 = scmp.lt.s32.totalorder %s26, 1
        %s361 = scalar_select %p360, %s26, 1
        %s362 = scalar_lea.vmem %s4, %s361
        %p363 = pneg %p115
        %p364 = pneg %p112
        %p365 = scmp.lt.s32.totalorder %s26, 1
        %s366 = scalar_select %p365, %s26, 1
        %s367 = smul.addr %s366, 4
        %s368 = smul.addr %s367, 4
        %s369 = scalar_lea.vmem %s5, %s368
        %p370 = pneg %p141
        %p371 = pneg %p138
        %p372 = scmp.lt.s32.totalorder %s26, 1
        %s373 = scalar_select %p372, %s26, 1
        %s374 = smul.addr %s373, 8
        %s375 = scalar_lea.vmem %s6, %s374
        %p376 = pneg %p167
        %p377 = pneg %p164
        %p378 = scmp.lt.s32.totalorder %s26, 1
        %s379 = scalar_select %p378, %s26, 1
        %s380 = smul.addr %s379, 4
        %s381 = smul.addr %s380, 4
        %s382 = scalar_lea.vmem %s7, %s381
        %p383 = pneg %p193
        %p384 = pneg %p190
        %p385 = scmp.lt.s32.totalorder %s26, 1
        %s386 = scalar_select %p385, %s26, 1
        %s387 = scalar_lea.vmem %s8, %s386
        %p388 = pneg %p219
        %p389 = pneg %p216
        %p390 = scmp.lt.s32.totalorder %s26, 1
        %s391 = scalar_select %p390, %s26, 1
        %s392 = smul.addr %s391, 8
        %s393 = smul.addr %s392, 4
        %s394 = scalar_lea.vmem %s9, %s393
        %p395 = pneg %p245
        %p396 = pneg %p242
        %p397 = pneg %p266
        %p398 = pneg %p263
        %p399 = scmp.lt.s32.totalorder %s26, 1
        %s400 = scalar_select %p399, %s26, 1
        %s401 = smul.addr %s400, 4
        %s402 = smul.addr %s401, 4
        %s403 = scalar_lea.vmem %s3, %s402
        %p404 = scmp.lt.s32.totalorder %s26, 1
        %s405 = scalar_select %p404, %s26, 1
        %s406 = scalar_lea.vmem %s4, %s405
        %p407 = scmp.lt.s32.totalorder %s26, 1
        %s408 = scalar_select %p407, %s26, 1
        %s409 = smul.addr %s408, 4
        %s410 = smul.addr %s409, 4
        %s411 = scalar_lea.vmem %s5, %s410
        %p412 = scmp.lt.s32.totalorder %s26, 1
        %s413 = scalar_select %p412, %s26, 1
        %s414 = smul.addr %s413, 8
        %s415 = scalar_lea.vmem %s6, %s414
        %p416 = scmp.lt.s32.totalorder %s26, 1
        %s417 = scalar_select %p416, %s26, 1
        %s418 = smul.addr %s417, 4
        %s419 = smul.addr %s418, 4
        %s420 = scalar_lea.vmem %s7, %s419
        %p421 = scmp.lt.s32.totalorder %s26, 1
        %s422 = scalar_select %p421, %s26, 1
        %s423 = scalar_lea.vmem %s8, %s422
        %p424 = scmp.lt.s32.totalorder %s26, 1
        %s425 = scalar_select %p424, %s26, 1
        %s426 = smul.addr %s425, 8
        %s427 = smul.addr %s426, 4
        %s428 = scalar_lea.vmem %s9, %s427
        %p430 = scmp.eq.s32.totalorder %s26, 0
        // Predicated region
        $region57: #{bert_class_forward.1} parent=55 // pred_check
          %p431 = pneg %p430
        $region58: #{bert_class_forward.1} parent=55 // pred_check_branch
          %433 = sbr.rel (%p431) target = $region60
        $region59: #{bert_class_forward.1} parent=55 // pred_region
          $region61: #{bert_class_forward.1} parent=59
            #allocation5 [shape = 's32[1]{0}', space=sflag, size = 0x4, scoped, tag = 'scoped memory for bert_class_forward.1']
            %p435 = scmp.lt.u32.totalorder 8, 8
            %p436 = pneg %p435
            // Predicated region
            $region62: #{bert_class_forward.1} parent=61 // pred_check
              _
            $region63: #{bert_class_forward.1} parent=61 // pred_check_branch
              %438 = sbr.rel (%p435) target = $region65
            $region64: #{bert_class_forward.1} parent=61 // pred_region
              %s454 = sand.u32 8, 7
              %p455 = scmp.eq.s32.totalorder %s454, 0
              // Predicated region
              $region77: #{bert_class_forward.1} parent=64 // pred_check
                %p456 = pneg %p455
              $region78: #{bert_class_forward.1} parent=64 // pred_check_branch
                %458 = sbr.rel (%p456) target = $region80
              $region79: #{bert_class_forward.1} parent=64 // pred_region
                loop: start=0, step=1, limit=1
                $region81: #{bert_class_forward.1} parent=79 // loop_pre_header
                  _
                $region82: #{bert_class_forward.1} parent=79 // loop_header
                  %s460 = sphi 0, %s464
                  %p461 = scmp.ge.s32.totalorder %s460, 1
                  %s465 = sphi %s0, %s0
                  %s466 = sphi [#allocation2], [#allocation2]
                $region83: #{bert_class_forward.1} parent=79 // loop_header_branch
                  %463 = sbr.rel (%p461) target = $region87
                $region84: #{bert_class_forward.1} parent=79 // loop_body
                  %v467 = vld [vmem:[%s465] sm:$0xff]
                  %468 = vst [vmem:[%s466] sm:$0xff] %v467
                $region85: #{bert_class_forward.1} parent=79 // loop_footer
                  %s464 = sadd.s32 1, %s460
                $region86: #{bert_class_forward.1} parent=79 // loop_footer_branch
                  %459 = sbr.rel target = $region82
                $region87: #{bert_class_forward.1} parent=79 // loop_exit
                  _
              $region80: #{bert_class_forward.1} parent=64 // pred_fallthru
                _
              %p469 = pneg %p455
              // Predicated region
              $region88: #{bert_class_forward.1} parent=64 // pred_check
                _
              $region89: #{bert_class_forward.1} parent=64 // pred_check_branch
                %471 = sbr.rel (%p455) target = $region91
              $region90: #{bert_class_forward.1} parent=64 // pred_region
                %s472 = sand.u32 8, 7
              $region91: #{bert_class_forward.1} parent=64 // pred_fallthru
                _
            $region65: #{bert_class_forward.1} parent=61 // pred_fallthru
              _
            // Predicated region
            $region66: #{bert_class_forward.1} parent=61 // pred_check
              %p439 = pneg %p435
            $region67: #{bert_class_forward.1} parent=61 // pred_check_branch
              %441 = sbr.rel (%p439) target = $region69
            $region68: #{bert_class_forward.1} parent=61 // pred_region
              %s442 = sshll.u32 1, 8
              %s443 = ssub.s32 %s442, 1
              loop: start=0, step=1, limit=1
              $region70: #{bert_class_forward.1} parent=68 // loop_pre_header
                _
              $region71: #{bert_class_forward.1} parent=68 // loop_header
                %s445 = sphi 0, %s449
                %p446 = scmp.ge.s32.totalorder %s445, 1
                %s450 = sphi %s0, %s0
                %s451 = sphi [#allocation2], [#allocation2]
              $region72: #{bert_class_forward.1} parent=68 // loop_header_branch
                %448 = sbr.rel (%p446) target = $region76
              $region73: #{bert_class_forward.1} parent=68 // loop_body
                %v452 = vld [vmem:[%s450] sm:%s443]
                %453 = vst [vmem:[%s451] sm:%s443] %v452
              $region74: #{bert_class_forward.1} parent=68 // loop_footer
                %s449 = sadd.s32 1, %s445
              $region75: #{bert_class_forward.1} parent=68 // loop_footer_branch
                %444 = sbr.rel target = $region71
              $region76: #{bert_class_forward.1} parent=68 // loop_exit
                _
            $region69: #{bert_class_forward.1} parent=61 // pred_fallthru
              _
            // Predicated region
            $region92: #{bert_class_forward.1} parent=61 // pred_check
              _
            $region93: #{bert_class_forward.1} parent=61 // pred_check_branch
              %475 = sbr.rel (0) target = $region95
            $region94: #{bert_class_forward.1} parent=61 // pred_region
              %476 = vsyncadd [#allocation5], 128
            $region95: #{bert_class_forward.1} parent=61 // pred_fallthru
              _
            %s477 = smul.u32 4, 2
            %s478 = smul.u32 %s477, 1
            %s479 = sshll.u32 %s478, 4
            %480 = dma.done [#allocation5], %s479
          %v481 = vld [vmem:[%s2] sm:$0x1]
          %v482 = vld [vmem:[%s2 + $0x1] sm:$0x1]
          %v483 = vld [vmem:[#allocation2] sm:$0xf]
          %v484 = vld [vmem:[#allocation2 + $0x4] sm:$0xf]
          %v485 = vunpack.c.l.bf16 %v483
          %v486 = vunpack.c.l.bf16 %v484
          %vm487 = vcmask 261120
          %v488 = vsel %vm487, %v485, 0.0
          %489 = vadd.xlane.f32.xlu0 %v488
          %v490 = vpop.xlane.xlu0 %489
          %v491 = vsel %vm487, %v486, 0.0
          %492 = vadd.xlane.f32.xlu0 %v491
          %v493 = vpop.xlane.xlu0 %492
          %v494 = vrcp.pop 32.0
          %v495 = vmul.f32 %v490, %v494
          %v496 = vmul.f32 %v493, %v494
          %v497 = vsub.f32 %v485, %v495
          %v498 = vsub.f32 %v486, %v496
          %v499 = vmul.f32 %v497, %v497
          %v500 = vmul.f32 %v498, %v498
          %v501 = vsel %vm487, %v499, 0.0
          %502 = vadd.xlane.f32.xlu0 %v501
          %v503 = vpop.xlane.xlu0 %502
          %v504 = vsel %vm487, %v500, 0.0
          %505 = vadd.xlane.f32.xlu0 %v504
          %v506 = vpop.xlane.xlu0 %505
          %v507 = vmul.f32 %v503, %v494
          %v508 = vmul.f32 %v506, %v494
          %v509 = vadd.f32 %v507, 1e-12
          %v510 = vadd.f32 %v508, 1e-12
          %v511 = vrsqrt.pop %v509
          %v512 = vrsqrt.pop %v510
          %v513 = vmul.f32 %v497, %v511
          %v514 = vmul.f32 %v498, %v512
          %v515 = vlaneseq
          %v516 = vshrl.u32 %v515, 7
          %v517 = vsub.s32 0, %v516
          %v518 = vrot.slane %v481, %v517
          %v519 = vmul.f32 %v513, %v518
          %v520 = vmul.f32 %v514, %v518
          %v521 = vlaneseq
          %v522 = vshrl.u32 %v521, 7
          %v523 = vsub.s32 0, %v522
          %v524 = vrot.slane %v482, %v523
          %v525 = vadd.f32 %v519, %v524
          %v526 = vadd.f32 %v520, %v524
          %v527 = vpack.c.bf16 %v526, %v525
          %v529 = vunpack.c.l.b16 %v527
          %v530 = vunpack.c.h.b16 %v527
          %v531 = vpack.c.b16 %v529, %v529
          %v532 = vpack.c.b16 %v530, %v530
          %vm535 = vcmask 257024
          %536 = vst.msk [vmem:[#allocation2] sm:$0xf] %vm535, %v531
          %537 = vst.msk [vmem:[#allocation2 + $0x4] sm:$0xf] %vm535, %v532
        $region60: #{bert_class_forward.1} parent=55 // pred_fallthru
          _
        %v538 = vld [vmem:[#allocation2] sm:$0xf]
        %v539 = vld [vmem:[#allocation2 + $0x4] sm:$0xf]
        %v540 = vunpack.c.l.bf16 %v538
        %v541 = vunpack.c.l.bf16 %v539
        %v542 = vld [vmem:[%s403] sm:$0xf]
        %v543 = vld [vmem:[%s403 + $0x4] sm:$0xf]
        %v544 = vld [vmem:[%s403 + $0x8] sm:$0xf]
        %v545 = vld [vmem:[%s403 + $0xc] sm:$0xf]
        %v546 = vld [vmem:[%s406] sm:$0x1]
        %v548 = vlaneseq
        %v549 = vshrl.u32 %v548, 7
        %v550 = vsub.s32 0, %v549
        %v551 = vrot.slane %v546, %v550
        %v555 = vunpack.c.l.b16 %v538
        %v556 = vunpack.c.l.b16 %v539
        %v557 = vpack.c.b16 %v556, %v555
        %v562 = vunpack.c.l.b16 %v542
        %v563 = vunpack.c.l.b16 %v543
        %v564 = vunpack.c.l.b16 %v544
        %v565 = vunpack.c.l.b16 %v545
        %v566 = vpack.c.b16 %v563, %v562
        %v567 = vpack.c.b16 %v565, %v564
        %vm570 = vcmask 261120
        %v572 = vsel %vm570, %v557, 0
        %574 = vmatprep.subr.bf16.mxu0 0
        %575 = vmatpush1.bf16.msra.mxu0 0
        %576 = vmatprep.subr.bf16.mxu0 0
        %577 = vmatpush1.bf16.msra.mxu0 0
        %578 = vmatprep.subr.bf16.mxu0 0
        %579 = vmatpush1.bf16.msra.mxu0 0
        %580 = vmatprep.subr.bf16.mxu0 0
        %581 = vmatpush1.bf16.msra.mxu0 0
        %582 = vmatprep.subr.bf16.mxu0 0
        %583 = vmatpush1.bf16.msra.mxu0 0
        %584 = vmatprep.subr.bf16.mxu0 0
        %585 = vmatpush1.bf16.msra.mxu0 0
        %586 = vmatprep.subr.bf16.mxu0 0
        %587 = vmatpush1.bf16.msra.mxu0 %v567
        %588 = vmatprep.subr.bf16.mxu0 0
        %589 = vmatpush1.bf16.msra.mxu0 %v566
        %590 = vmatprep.subr.bf16.mxu0 0
        %591 = vmatpush2.bf16.msra.mxu0 0
        %592 = vmatprep.subr.bf16.mxu0 0
        %593 = vmatpush2.bf16.msra.mxu0 0
        %594 = vmatprep.subr.bf16.mxu0 0
        %595 = vmatpush2.bf16.msra.mxu0 0
        %596 = vmatprep.subr.bf16.mxu0 0
        %597 = vmatpush2.bf16.msra.mxu0 0
        %598 = vmatprep.subr.bf16.mxu0 0
        %599 = vmatpush2.bf16.msra.mxu0 0
        %600 = vmatprep.subr.bf16.mxu0 0
        %601 = vmatpush2.bf16.msra.mxu0 0
        %602 = vmatprep.subr.bf16.mxu0 0
        %603 = vmatpush2.bf16.msra.mxu0 0
        %604 = vmatprep.subr.bf16.mxu0 0
        %605 = vmatpush2.bf16.msra.mxu0 0
        %606 = vmatprep.mubr.bf16.mxu0 0
        %607 = vmatmul.mubr.bf16.gmra.mxu0 %v572
        %v608 = vpop.f32.mrf.mxu0
        %v609 = vadd.f32 %v551, %v608
        %v610 = vpop.f32.mrf.mxu0
        %v611 = vpop.f32.mrf.mxu0
        %v612 = vadd.f32 %v551, %v611
        %v613 = vpop.f32.mrf.mxu0
        %614 = vdwg.mxu0
        %617 = vrot.lane.b32.xlu0 %v609, 112
        %v618 = vpop.permute.xlu0 %617
        %619 = vrot.lane.b32.xlu0 %v612, 112
        %v620 = vpop.permute.xlu0 %619
        %v623 = vpack.c.bf16 %v609, %v609
        %v624 = vpack.c.bf16 %v612, %v612
        %v625 = vpack.c.bf16 %v618, %v618
        %v626 = vpack.c.bf16 %v620, %v620
        %v627 = vld [vmem:[%s1] sm:$0x1]
        %v628 = vld [vmem:[%s1 + $0x1] sm:$0x1]
        %v629 = vld [vmem:[%s1 + $0x2] sm:$0x1]
        %v630 = vld [vmem:[%s1 + $0x3] sm:$0x1]
        %v635 = vlaneseq
        %v636 = vshrl.u32 %v635, 7
        %v637 = vsub.s32 0, %v636
        %v638 = vrot.slane %v627, %v637
        %v639 = vlaneseq
        %v640 = vshrl.u32 %v639, 7
        %v641 = vsub.s32 0, %v640
        %v642 = vrot.slane %v628, %v641
        %v643 = vlaneseq
        %v644 = vshrl.u32 %v643, 7
        %v645 = vsub.s32 0, %v644
        %v646 = vrot.slane %v629, %v645
        %v647 = vlaneseq
        %v648 = vshrl.u32 %v647, 7
        %v649 = vsub.s32 0, %v648
        %v650 = vrot.slane %v630, %v649
        %656 = vrot.lane.b32.xlu0 %v623, 96
        %v657 = vpop.permute.xlu0 %656
        %vm658 = vcmask 130048
        %v660 = vsel %vm658, %v623, 0
        %v663 = vsel %vm658, %v657, 0
        %665 = vmatprep.subr.bf16.mxu0 0
        %666 = vmatpush1.bf16.xpose.msra.mxu0 0
        %667 = vmatprep.subr.bf16.mxu0 0
        %668 = vmatpush1.bf16.xpose.msra.mxu0 0
        %669 = vmatprep.subr.bf16.mxu0 0
        %670 = vmatpush1.bf16.xpose.msra.mxu0 0
        %671 = vmatprep.subr.bf16.mxu0 0
        %672 = vmatpush1.bf16.xpose.msra.mxu0 0
        %673 = vmatprep.subr.bf16.mxu0 0
        %674 = vmatpush1.bf16.xpose.msra.mxu0 0
        %675 = vmatprep.subr.bf16.mxu0 0
        %676 = vmatpush1.bf16.xpose.msra.mxu0 0
        %677 = vmatprep.subr.bf16.mxu0 0
        %678 = vmatpush1.bf16.xpose.msra.mxu0 0
        %679 = vmatprep.subr.bf16.mxu0 0
        %680 = vmatpush1.bf16.xpose.msra.mxu0 %v663
        %681 = vmatprep.subr.bf16.mxu0 0
        %682 = vmatpush2.bf16.xpose.msra.mxu0 0
        %683 = vmatprep.subr.bf16.mxu0 0
        %684 = vmatpush2.bf16.xpose.msra.mxu0 0
        %685 = vmatprep.subr.bf16.mxu0 0
        %686 = vmatpush2.bf16.xpose.msra.mxu0 0
        %687 = vmatprep.subr.bf16.mxu0 0
        %688 = vmatpush2.bf16.xpose.msra.mxu0 0
        %689 = vmatprep.subr.bf16.mxu0 0
        %690 = vmatpush2.bf16.xpose.msra.mxu0 0
        %691 = vmatprep.subr.bf16.mxu0 0
        %692 = vmatpush2.bf16.xpose.msra.mxu0 0
        %693 = vmatprep.subr.bf16.mxu0 0
        %694 = vmatpush2.bf16.xpose.msra.mxu0 0
        %695 = vmatprep.subr.bf16.mxu0 0
        %696 = vmatpush2.bf16.xpose.msra.mxu0 0
        %697 = vmatprep.mubr.bf16.mxu0 0
        %698 = vmatmul.mubr.bf16.gmra.mxu0 %v660
        %v699 = vpop.f32.mrf.mxu0
        %v700 = vadd.f32 %v638, %v699
        %v701 = vpop.f32.mrf.mxu0
        %v702 = vpop.f32.mrf.mxu0
        %v703 = vpop.f32.mrf.mxu0
        %704 = vdwg.mxu0
        %706 = vrot.lane.b32.xlu0 %v624, 96
        %v707 = vpop.permute.xlu0 %706
        %v709 = vsel %vm658, %v624, 0
        %v712 = vsel %vm658, %v707, 0
        %714 = vmatprep.subr.bf16.mxu0 0
        %715 = vmatpush1.bf16.xpose.msra.mxu0 0
        %716 = vmatprep.subr.bf16.mxu0 0
        %717 = vmatpush1.bf16.xpose.msra.mxu0 0
        %718 = vmatprep.subr.bf16.mxu0 0
        %719 = vmatpush1.bf16.xpose.msra.mxu0 0
        %720 = vmatprep.subr.bf16.mxu0 0
        %721 = vmatpush1.bf16.xpose.msra.mxu0 0
        %722 = vmatprep.subr.bf16.mxu0 0
        %723 = vmatpush1.bf16.xpose.msra.mxu0 0
        %724 = vmatprep.subr.bf16.mxu0 0
        %725 = vmatpush1.bf16.xpose.msra.mxu0 0
        %726 = vmatprep.subr.bf16.mxu0 0
        %727 = vmatpush1.bf16.xpose.msra.mxu0 0
        %728 = vmatprep.subr.bf16.mxu0 0
        %729 = vmatpush1.bf16.xpose.msra.mxu0 %v712
        %730 = vmatprep.subr.bf16.mxu0 0
        %731 = vmatpush2.bf16.xpose.msra.mxu0 0
        %732 = vmatprep.subr.bf16.mxu0 0
        %733 = vmatpush2.bf16.xpose.msra.mxu0 0
        %734 = vmatprep.subr.bf16.mxu0 0
        %735 = vmatpush2.bf16.xpose.msra.mxu0 0
        %736 = vmatprep.subr.bf16.mxu0 0
        %737 = vmatpush2.bf16.xpose.msra.mxu0 0
        %738 = vmatprep.subr.bf16.mxu0 0
        %739 = vmatpush2.bf16.xpose.msra.mxu0 0
        %740 = vmatprep.subr.bf16.mxu0 0
        %741 = vmatpush2.bf16.xpose.msra.mxu0 0
        %742 = vmatprep.subr.bf16.mxu0 0
        %743 = vmatpush2.bf16.xpose.msra.mxu0 0
        %744 = vmatprep.subr.bf16.mxu0 0
        %745 = vmatpush2.bf16.xpose.msra.mxu0 0
        %746 = vmatprep.mubr.bf16.mxu0 0
        %747 = vmatmul.mubr.bf16.gmra.mxu0 %v709
        %v748 = vpop.f32.mrf.mxu0
        %v749 = vadd.f32 %v642, %v748
        %v750 = vpop.f32.mrf.mxu0
        %v751 = vpop.f32.mrf.mxu0
        %v752 = vpop.f32.mrf.mxu0
        %753 = vdwg.mxu0
        %755 = vrot.lane.b32.xlu0 %v625, 96
        %v756 = vpop.permute.xlu0 %755
        %v758 = vsel %vm658, %v625, 0
        %v761 = vsel %vm658, %v756, 0
        %763 = vmatprep.subr.bf16.mxu0 0
        %764 = vmatpush1.bf16.xpose.msra.mxu0 0
        %765 = vmatprep.subr.bf16.mxu0 0
        %766 = vmatpush1.bf16.xpose.msra.mxu0 0
        %767 = vmatprep.subr.bf16.mxu0 0
        %768 = vmatpush1.bf16.xpose.msra.mxu0 0
        %769 = vmatprep.subr.bf16.mxu0 0
        %770 = vmatpush1.bf16.xpose.msra.mxu0 0
        %771 = vmatprep.subr.bf16.mxu0 0
        %772 = vmatpush1.bf16.xpose.msra.mxu0 0
        %773 = vmatprep.subr.bf16.mxu0 0
        %774 = vmatpush1.bf16.xpose.msra.mxu0 0
        %775 = vmatprep.subr.bf16.mxu0 0
        %776 = vmatpush1.bf16.xpose.msra.mxu0 0
        %777 = vmatprep.subr.bf16.mxu0 0
        %778 = vmatpush1.bf16.xpose.msra.mxu0 %v761
        %779 = vmatprep.subr.bf16.mxu0 0
        %780 = vmatpush2.bf16.xpose.msra.mxu0 0
        %781 = vmatprep.subr.bf16.mxu0 0
        %782 = vmatpush2.bf16.xpose.msra.mxu0 0
        %783 = vmatprep.subr.bf16.mxu0 0
        %784 = vmatpush2.bf16.xpose.msra.mxu0 0
        %785 = vmatprep.subr.bf16.mxu0 0
        %786 = vmatpush2.bf16.xpose.msra.mxu0 0
        %787 = vmatprep.subr.bf16.mxu0 0
        %788 = vmatpush2.bf16.xpose.msra.mxu0 0
        %789 = vmatprep.subr.bf16.mxu0 0
        %790 = vmatpush2.bf16.xpose.msra.mxu0 0
        %791 = vmatprep.subr.bf16.mxu0 0
        %792 = vmatpush2.bf16.xpose.msra.mxu0 0
        %793 = vmatprep.subr.bf16.mxu0 0
        %794 = vmatpush2.bf16.xpose.msra.mxu0 0
        %795 = vmatprep.mubr.bf16.mxu0 0
        %796 = vmatmul.mubr.bf16.gmra.mxu0 %v758
        %v797 = vpop.f32.mrf.mxu0
        %v798 = vadd.f32 %v646, %v797
        %v799 = vpop.f32.mrf.mxu0
        %v800 = vpop.f32.mrf.mxu0
        %v801 = vpop.f32.mrf.mxu0
        %802 = vdwg.mxu0
        %804 = vrot.lane.b32.xlu0 %v626, 96
        %v805 = vpop.permute.xlu0 %804
        %v807 = vsel %vm658, %v626, 0
        %v810 = vsel %vm658, %v805, 0
        %812 = vmatprep.subr.bf16.mxu0 0
        %813 = vmatpush1.bf16.xpose.msra.mxu0 0
        %814 = vmatprep.subr.bf16.mxu0 0
        %815 = vmatpush1.bf16.xpose.msra.mxu0 0
        %816 = vmatprep.subr.bf16.mxu0 0
        %817 = vmatpush1.bf16.xpose.msra.mxu0 0
        %818 = vmatprep.subr.bf16.mxu0 0
        %819 = vmatpush1.bf16.xpose.msra.mxu0 0
        %820 = vmatprep.subr.bf16.mxu0 0
        %821 = vmatpush1.bf16.xpose.msra.mxu0 0
        %822 = vmatprep.subr.bf16.mxu0 0
        %823 = vmatpush1.bf16.xpose.msra.mxu0 0
        %824 = vmatprep.subr.bf16.mxu0 0
        %825 = vmatpush1.bf16.xpose.msra.mxu0 0
        %826 = vmatprep.subr.bf16.mxu0 0
        %827 = vmatpush1.bf16.xpose.msra.mxu0 %v810
        %828 = vmatprep.subr.bf16.mxu0 0
        %829 = vmatpush2.bf16.xpose.msra.mxu0 0
        %830 = vmatprep.subr.bf16.mxu0 0
        %831 = vmatpush2.bf16.xpose.msra.mxu0 0
        %832 = vmatprep.subr.bf16.mxu0 0
        %833 = vmatpush2.bf16.xpose.msra.mxu0 0
        %834 = vmatprep.subr.bf16.mxu0 0
        %835 = vmatpush2.bf16.xpose.msra.mxu0 0
        %836 = vmatprep.subr.bf16.mxu0 0
        %837 = vmatpush2.bf16.xpose.msra.mxu0 0
        %838 = vmatprep.subr.bf16.mxu0 0
        %839 = vmatpush2.bf16.xpose.msra.mxu0 0
        %840 = vmatprep.subr.bf16.mxu0 0
        %841 = vmatpush2.bf16.xpose.msra.mxu0 0
        %842 = vmatprep.subr.bf16.mxu0 0
        %843 = vmatpush2.bf16.xpose.msra.mxu0 0
        %844 = vmatprep.mubr.bf16.mxu0 0
        %845 = vmatmul.mubr.bf16.gmra.mxu0 %v807
        %v846 = vpop.f32.mrf.mxu0
        %v847 = vadd.f32 %v650, %v846
        %v848 = vpop.f32.mrf.mxu0
        %v849 = vpop.f32.mrf.mxu0
        %v850 = vpop.f32.mrf.mxu0
        %851 = vdwg.mxu0
        %vm852 = vcmask 64512
        %v853 = vsel %vm852, %v700, -inf
        %854 = vmax.xlane.f32.xlu0 %v853
        %v855 = vpop.xlane.xlu0 %854
        %v856 = vsel %vm852, %v749, -inf
        %857 = vmax.xlane.f32.xlu0 %v856
        %v858 = vpop.xlane.xlu0 %857
        %v859 = vsel %vm852, %v798, -inf
        %860 = vmax.xlane.f32.xlu0 %v859
        %v861 = vpop.xlane.xlu0 %860
        %v862 = vsel %vm852, %v847, -inf
        %863 = vmax.xlane.f32.xlu0 %v862
        %v864 = vpop.xlane.xlu0 %863
        %v865 = vsub.f32 %v700, %v855
        %v866 = vsub.f32 %v749, %v858
        %v867 = vsub.f32 %v798, %v861
        %v868 = vsub.f32 %v847, %v864
        %v869 = vmul.f32 %v865, 1.442695
        %v870 = vpow.pop %v869
        %v871 = vmul.f32 %v866, 1.442695
        %v872 = vpow.pop %v871
        %v873 = vmul.f32 %v867, 1.442695
        %v874 = vpow.pop %v873
        %v875 = vmul.f32 %v868, 1.442695
        %v876 = vpow.pop %v875
        %v877 = vsel %vm852, %v870, 0.0
        %878 = vadd.xlane.f32.xlu0 %v877
        %v879 = vpop.xlane.xlu0 %878
        %v880 = vsel %vm852, %v872, 0.0
        %881 = vadd.xlane.f32.xlu0 %v880
        %v882 = vpop.xlane.xlu0 %881
        %v883 = vsel %vm852, %v874, 0.0
        %884 = vadd.xlane.f32.xlu0 %v883
        %v885 = vpop.xlane.xlu0 %884
        %v886 = vsel %vm852, %v876, 0.0
        %887 = vadd.xlane.f32.xlu0 %v886
        %v888 = vpop.xlane.xlu0 %887
        %v889 = vrcp.pop %v879
        %v890 = vrcp.pop %v882
        %v891 = vrcp.pop %v885
        %v892 = vrcp.pop %v888
        %v893 = vmul.f32 %v870, %v889
        %v894 = vmul.f32 %v872, %v890
        %v895 = vmul.f32 %v874, %v891
        %v896 = vmul.f32 %v876, %v892
        %v897 = vpack.c.bf16 %v893, %v893
        %v898 = vpack.c.bf16 %v894, %v894
        %v899 = vpack.c.bf16 %v895, %v895
        %v900 = vpack.c.bf16 %v896, %v896
        %901 = vrot.lane.b32.xlu0 %v623, 64
        %v902 = vpop.permute.xlu0 %901
        %v904 = vsel %vm852, %v897, 0
        %vm906 = vcmask 1043456
        %v908 = vsel %vm906, %v902, 0
        %910 = vmatprep.subr.bf16.mxu0 0
        %911 = vmatpush1.bf16.msra.mxu0 0
        %912 = vmatprep.subr.bf16.mxu0 0
        %913 = vmatpush1.bf16.msra.mxu0 0
        %914 = vmatprep.subr.bf16.mxu0 0
        %915 = vmatpush1.bf16.msra.mxu0 0
        %916 = vmatprep.subr.bf16.mxu0 0
        %917 = vmatpush1.bf16.msra.mxu0 0
        %918 = vmatprep.subr.bf16.mxu0 0
        %919 = vmatpush1.bf16.msra.mxu0 0
        %920 = vmatprep.subr.bf16.mxu0 0
        %921 = vmatpush1.bf16.msra.mxu0 0
        %922 = vmatprep.subr.bf16.mxu0 0
        %923 = vmatpush1.bf16.msra.mxu0 0
        %924 = vmatprep.subr.bf16.mxu0 0
        %925 = vmatpush1.bf16.msra.mxu0 %v908
        %926 = vmatprep.subr.bf16.mxu0 0
        %927 = vmatpush2.bf16.msra.mxu0 0
        %928 = vmatprep.subr.bf16.mxu0 0
        %929 = vmatpush2.bf16.msra.mxu0 0
        %930 = vmatprep.subr.bf16.mxu0 0
        %931 = vmatpush2.bf16.msra.mxu0 0
        %932 = vmatprep.subr.bf16.mxu0 0
        %933 = vmatpush2.bf16.msra.mxu0 0
        %934 = vmatprep.subr.bf16.mxu0 0
        %935 = vmatpush2.bf16.msra.mxu0 0
        %936 = vmatprep.subr.bf16.mxu0 0
        %937 = vmatpush2.bf16.msra.mxu0 0
        %938 = vmatprep.subr.bf16.mxu0 0
        %939 = vmatpush2.bf16.msra.mxu0 0
        %940 = vmatprep.subr.bf16.mxu0 0
        %941 = vmatpush2.bf16.msra.mxu0 0
        %942 = vmatprep.mubr.bf16.mxu0 0
        %943 = vmatmul.mubr.bf16.gmra.mxu0 %v904
        %v944 = vpop.f32.mrf.mxu0
        %v945 = vadd.f32 0.0, %v944
        %v946 = vpop.f32.mrf.mxu0
        %v947 = vpop.f32.mrf.mxu0
        %v948 = vpop.f32.mrf.mxu0
        %949 = vdwg.mxu0
        %950 = vrot.lane.b32.xlu0 %v624, 64
        %v951 = vpop.permute.xlu0 %950
        %v953 = vsel %vm852, %v898, 0
        %v956 = vsel %vm906, %v951, 0
        %958 = vmatprep.subr.bf16.mxu0 0
        %959 = vmatpush1.bf16.msra.mxu0 0
        %960 = vmatprep.subr.bf16.mxu0 0
        %961 = vmatpush1.bf16.msra.mxu0 0
        %962 = vmatprep.subr.bf16.mxu0 0
        %963 = vmatpush1.bf16.msra.mxu0 0
        %964 = vmatprep.subr.bf16.mxu0 0
        %965 = vmatpush1.bf16.msra.mxu0 0
        %966 = vmatprep.subr.bf16.mxu0 0
        %967 = vmatpush1.bf16.msra.mxu0 0
        %968 = vmatprep.subr.bf16.mxu0 0
        %969 = vmatpush1.bf16.msra.mxu0 0
        %970 = vmatprep.subr.bf16.mxu0 0
        %971 = vmatpush1.bf16.msra.mxu0 0
        %972 = vmatprep.subr.bf16.mxu0 0
        %973 = vmatpush1.bf16.msra.mxu0 %v956
        %974 = vmatprep.subr.bf16.mxu0 0
        %975 = vmatpush2.bf16.msra.mxu0 0
        %976 = vmatprep.subr.bf16.mxu0 0
        %977 = vmatpush2.bf16.msra.mxu0 0
        %978 = vmatprep.subr.bf16.mxu0 0
        %979 = vmatpush2.bf16.msra.mxu0 0
        %980 = vmatprep.subr.bf16.mxu0 0
        %981 = vmatpush2.bf16.msra.mxu0 0
        %982 = vmatprep.subr.bf16.mxu0 0
        %983 = vmatpush2.bf16.msra.mxu0 0
        %984 = vmatprep.subr.bf16.mxu0 0
        %985 = vmatpush2.bf16.msra.mxu0 0
        %986 = vmatprep.subr.bf16.mxu0 0
        %987 = vmatpush2.bf16.msra.mxu0 0
        %988 = vmatprep.subr.bf16.mxu0 0
        %989 = vmatpush2.bf16.msra.mxu0 0
        %990 = vmatprep.mubr.bf16.mxu0 0
        %991 = vmatmul.mubr.bf16.gmra.mxu0 %v953
        %v992 = vpop.f32.mrf.mxu0
        %v993 = vadd.f32 0.0, %v992
        %v994 = vpop.f32.mrf.mxu0
        %v995 = vpop.f32.mrf.mxu0
        %v996 = vpop.f32.mrf.mxu0
        %997 = vdwg.mxu0
        %998 = vrot.lane.b32.xlu0 %v625, 64
        %v999 = vpop.permute.xlu0 %998
        %v1001 = vsel %vm852, %v899, 0
        %v1004 = vsel %vm906, %v999, 0
        %1006 = vmatprep.subr.bf16.mxu0 0
        %1007 = vmatpush1.bf16.msra.mxu0 0
        %1008 = vmatprep.subr.bf16.mxu0 0
        %1009 = vmatpush1.bf16.msra.mxu0 0
        %1010 = vmatprep.subr.bf16.mxu0 0
        %1011 = vmatpush1.bf16.msra.mxu0 0
        %1012 = vmatprep.subr.bf16.mxu0 0
        %1013 = vmatpush1.bf16.msra.mxu0 0
        %1014 = vmatprep.subr.bf16.mxu0 0
        %1015 = vmatpush1.bf16.msra.mxu0 0
        %1016 = vmatprep.subr.bf16.mxu0 0
        %1017 = vmatpush1.bf16.msra.mxu0 0
        %1018 = vmatprep.subr.bf16.mxu0 0
        %1019 = vmatpush1.bf16.msra.mxu0 0
        %1020 = vmatprep.subr.bf16.mxu0 0
        %1021 = vmatpush1.bf16.msra.mxu0 %v1004
        %1022 = vmatprep.subr.bf16.mxu0 0
        %1023 = vmatpush2.bf16.msra.mxu0 0
        %1024 = vmatprep.subr.bf16.mxu0 0
        %1025 = vmatpush2.bf16.msra.mxu0 0
        %1026 = vmatprep.subr.bf16.mxu0 0
        %1027 = vmatpush2.bf16.msra.mxu0 0
        %1028 = vmatprep.subr.bf16.mxu0 0
        %1029 = vmatpush2.bf16.msra.mxu0 0
        %1030 = vmatprep.subr.bf16.mxu0 0
        %1031 = vmatpush2.bf16.msra.mxu0 0
        %1032 = vmatprep.subr.bf16.mxu0 0
        %1033 = vmatpush2.bf16.msra.mxu0 0
        %1034 = vmatprep.subr.bf16.mxu0 0
        %1035 = vmatpush2.bf16.msra.mxu0 0
        %1036 = vmatprep.subr.bf16.mxu0 0
        %1037 = vmatpush2.bf16.msra.mxu0 0
        %1038 = vmatprep.mubr.bf16.mxu0 0
        %1039 = vmatmul.mubr.bf16.gmra.mxu0 %v1001
        %v1040 = vpop.f32.mrf.mxu0
        %v1041 = vadd.f32 0.0, %v1040
        %v1042 = vpop.f32.mrf.mxu0
        %v1043 = vpop.f32.mrf.mxu0
        %v1044 = vpop.f32.mrf.mxu0
        %1045 = vdwg.mxu0
        %1046 = vrot.lane.b32.xlu0 %v626, 64
        %v1047 = vpop.permute.xlu0 %1046
        %v1049 = vsel %vm852, %v900, 0
        %v1052 = vsel %vm906, %v1047, 0
        %1054 = vmatprep.subr.bf16.mxu0 0
        %1055 = vmatpush1.bf16.msra.mxu0 0
        %1056 = vmatprep.subr.bf16.mxu0 0
        %1057 = vmatpush1.bf16.msra.mxu0 0
        %1058 = vmatprep.subr.bf16.mxu0 0
        %1059 = vmatpush1.bf16.msra.mxu0 0
        %1060 = vmatprep.subr.bf16.mxu0 0
        %1061 = vmatpush1.bf16.msra.mxu0 0
        %1062 = vmatprep.subr.bf16.mxu0 0
        %1063 = vmatpush1.bf16.msra.mxu0 0
        %1064 = vmatprep.subr.bf16.mxu0 0
        %1065 = vmatpush1.bf16.msra.mxu0 0
        %1066 = vmatprep.subr.bf16.mxu0 0
        %1067 = vmatpush1.bf16.msra.mxu0 0
        %1068 = vmatprep.subr.bf16.mxu0 0
        %1069 = vmatpush1.bf16.msra.mxu0 %v1052
        %1070 = vmatprep.subr.bf16.mxu0 0
        %1071 = vmatpush2.bf16.msra.mxu0 0
        %1072 = vmatprep.subr.bf16.mxu0 0
        %1073 = vmatpush2.bf16.msra.mxu0 0
        %1074 = vmatprep.subr.bf16.mxu0 0
        %1075 = vmatpush2.bf16.msra.mxu0 0
        %1076 = vmatprep.subr.bf16.mxu0 0
        %1077 = vmatpush2.bf16.msra.mxu0 0
        %1078 = vmatprep.subr.bf16.mxu0 0
        %1079 = vmatpush2.bf16.msra.mxu0 0
        %1080 = vmatprep.subr.bf16.mxu0 0
        %1081 = vmatpush2.bf16.msra.mxu0 0
        %1082 = vmatprep.subr.bf16.mxu0 0
        %1083 = vmatpush2.bf16.msra.mxu0 0
        %1084 = vmatprep.subr.bf16.mxu0 0
        %1085 = vmatpush2.bf16.msra.mxu0 0
        %1086 = vmatprep.mubr.bf16.mxu0 0
        %1087 = vmatmul.mubr.bf16.gmra.mxu0 %v1049
        %v1088 = vpop.f32.mrf.mxu0
        %v1089 = vadd.f32 0.0, %v1088
        %v1090 = vpop.f32.mrf.mxu0
        %v1091 = vpop.f32.mrf.mxu0
        %v1092 = vpop.f32.mrf.mxu0
        %1093 = vdwg.mxu0
        %1096 = vrot.lane.b32.xlu0 %v1041, 16
        %v1097 = vpop.permute.xlu0 %1096
        %1098 = vrot.lane.b32.xlu0 %v1089, 16
        %v1099 = vpop.permute.xlu0 %1098
        %v1102 = vsel %vm658, %v945, %v1097
        %v1103 = vsel %vm658, %v993, %v1099
        %v1104 = vld [vmem:[%s415] sm:$0x3f]
        %v1105 = vpack.c.bf16 %v1103, %v1102
        %v1106 = vld [vmem:[%s411] sm:$0xf]
        %v1107 = vld [vmem:[%s411 + $0x4] sm:$0xf]
        %v1108 = vld [vmem:[%s411 + $0x8] sm:$0xf]
        %v1109 = vld [vmem:[%s411 + $0xc] sm:$0xf]
        %v1110 = vlaneseq
        %v1111 = vshrl.u32 %v1110, 7
        %v1112 = vsub.s32 0, %v1111
        %v1113 = vrot.slane %v1104, %v1112
        %v1118 = vunpack.c.l.b16 %v1106
        %v1119 = vunpack.c.l.b16 %v1107
        %v1120 = vunpack.c.l.b16 %v1108
        %v1121 = vunpack.c.l.b16 %v1109
        %v1122 = vpack.c.b16 %v1119, %v1118
        %v1123 = vpack.c.b16 %v1121, %v1120
        %v1127 = vsel %vm570, %v1105, 0
        %1129 = vmatprep.subr.bf16.mxu0 0
        %1130 = vmatpush1.bf16.msra.mxu0 0
        %1131 = vmatprep.subr.bf16.mxu0 0
        %1132 = vmatpush1.bf16.msra.mxu0 0
        %1133 = vmatprep.subr.bf16.mxu0 0
        %1134 = vmatpush1.bf16.msra.mxu0 0
        %1135 = vmatprep.subr.bf16.mxu0 0
        %1136 = vmatpush1.bf16.msra.mxu0 0
        %1137 = vmatprep.subr.bf16.mxu0 0
        %1138 = vmatpush1.bf16.msra.mxu0 0
        %1139 = vmatprep.subr.bf16.mxu0 0
        %1140 = vmatpush1.bf16.msra.mxu0 0
        %1141 = vmatprep.subr.bf16.mxu0 0
        %1142 = vmatpush1.bf16.msra.mxu0 %v1123
        %1143 = vmatprep.subr.bf16.mxu0 0
        %1144 = vmatpush1.bf16.msra.mxu0 %v1122
        %1145 = vmatprep.subr.bf16.mxu0 0
        %1146 = vmatpush2.bf16.msra.mxu0 0
        %1147 = vmatprep.subr.bf16.mxu0 0
        %1148 = vmatpush2.bf16.msra.mxu0 0
        %1149 = vmatprep.subr.bf16.mxu0 0
        %1150 = vmatpush2.bf16.msra.mxu0 0
        %1151 = vmatprep.subr.bf16.mxu0 0
        %1152 = vmatpush2.bf16.msra.mxu0 0
        %1153 = vmatprep.subr.bf16.mxu0 0
        %1154 = vmatpush2.bf16.msra.mxu0 0
        %1155 = vmatprep.subr.bf16.mxu0 0
        %1156 = vmatpush2.bf16.msra.mxu0 0
        %1157 = vmatprep.subr.bf16.mxu0 0
        %1158 = vmatpush2.bf16.msra.mxu0 0
        %1159 = vmatprep.subr.bf16.mxu0 0
        %1160 = vmatpush2.bf16.msra.mxu0 0
        %1161 = vmatprep.mubr.bf16.mxu0 0
        %1162 = vmatmul.mubr.bf16.gmra.mxu0 %v1127
        %v1163 = vpop.f32.mrf.mxu0
        %v1164 = vadd.f32 %v1113, %v1163
        %v1165 = vpop.f32.mrf.mxu0
        %v1166 = vpop.f32.mrf.mxu0
        %v1167 = vadd.f32 %v1113, %v1166
        %v1168 = vpop.f32.mrf.mxu0
        %1169 = vdwg.mxu0
        %v1170 = vadd.f32 %v540, %v1164
        %v1171 = vadd.f32 %v541, %v1167
        %v1172 = vsel %vm570, %v1170, 0.0
        %1173 = vadd.xlane.f32.xlu0 %v1172
        %v1174 = vpop.xlane.xlu0 %1173
        %v1175 = vsel %vm570, %v1171, 0.0
        %1176 = vadd.xlane.f32.xlu0 %v1175
        %v1177 = vpop.xlane.xlu0 %1176
        %v1178 = vrcp.pop 32.0
        %v1179 = vmul.f32 %v1174, %v1178
        %v1180 = vmul.f32 %v1177, %v1178
        %v1181 = vsub.f32 %v1170, %v1179
        %v1182 = vsub.f32 %v1171, %v1180
        %v1183 = vmul.f32 %v1181, %v1181
        %v1184 = vmul.f32 %v1182, %v1182
        %v1185 = vsel %vm570, %v1183, 0.0
        %1186 = vadd.xlane.f32.xlu0 %v1185
        %v1187 = vpop.xlane.xlu0 %1186
        %v1188 = vsel %vm570, %v1184, 0.0
        %1189 = vadd.xlane.f32.xlu0 %v1188
        %v1190 = vpop.xlane.xlu0 %1189
        %v1191 = vmul.f32 %v1187, %v1178
        %v1192 = vmul.f32 %v1190, %v1178
        %v1193 = vadd.f32 %v1191, 1e-12
        %v1194 = vadd.f32 %v1192, 1e-12
        %v1195 = vrsqrt.pop %v1193
        %v1196 = vrsqrt.pop %v1194
        %v1197 = vmul.f32 %v1181, %v1195
        %v1198 = vmul.f32 %v1182, %v1196
        %v1199 = vlaneseq
        %v1200 = vshrl.u32 %v1199, 7
        %v1201 = vsub.s32 1, %v1200
        %v1202 = vrot.slane %v1104, %v1201
        %v1203 = vmul.f32 %v1197, %v1202
        %v1204 = vmul.f32 %v1198, %v1202
        %v1205 = vlaneseq
        %v1206 = vshrl.u32 %v1205, 7
        %v1207 = vsub.s32 2, %v1206
        %v1208 = vrot.slane %v1104, %v1207
        %v1209 = vadd.f32 %v1203, %v1208
        %v1210 = vadd.f32 %v1204, %v1208
        %v1211 = vpack.c.bf16 %v1210, %v1209
        %v1212 = vld [vmem:[%s420] sm:$0xf]
        %v1213 = vld [vmem:[%s420 + $0x4] sm:$0xf]
        %v1214 = vld [vmem:[%s420 + $0x8] sm:$0xf]
        %v1215 = vld [vmem:[%s420 + $0xc] sm:$0xf]
        %v1216 = vld [vmem:[%s423] sm:$0x1]
        %v1218 = vlaneseq
        %v1219 = vshrl.u32 %v1218, 7
        %v1220 = vsub.s32 0, %v1219
        %v1221 = vrot.slane %v1216, %v1220
        %v1227 = vunpack.c.l.b16 %v1212
        %v1228 = vunpack.c.l.b16 %v1213
        %v1229 = vunpack.c.l.b16 %v1214
        %v1230 = vunpack.c.l.b16 %v1215
        %v1231 = vpack.c.b16 %v1228, %v1227
        %v1232 = vpack.c.b16 %v1230, %v1229
        %v1236 = vsel %vm570, %v1211, 0
        %1238 = vmatprep.subr.bf16.mxu0 0
        %1239 = vmatpush1.bf16.msra.mxu0 0
        %1240 = vmatprep.subr.bf16.mxu0 0
        %1241 = vmatpush1.bf16.msra.mxu0 0
        %1242 = vmatprep.subr.bf16.mxu0 0
        %1243 = vmatpush1.bf16.msra.mxu0 0
        %1244 = vmatprep.subr.bf16.mxu0 0
        %1245 = vmatpush1.bf16.msra.mxu0 0
        %1246 = vmatprep.subr.bf16.mxu0 0
        %1247 = vmatpush1.bf16.msra.mxu0 0
        %1248 = vmatprep.subr.bf16.mxu0 0
        %1249 = vmatpush1.bf16.msra.mxu0 0
        %1250 = vmatprep.subr.bf16.mxu0 0
        %1251 = vmatpush1.bf16.msra.mxu0 %v1232
        %1252 = vmatprep.subr.bf16.mxu0 0
        %1253 = vmatpush1.bf16.msra.mxu0 %v1231
        %1254 = vmatprep.subr.bf16.mxu0 0
        %1255 = vmatpush2.bf16.msra.mxu0 0
        %1256 = vmatprep.subr.bf16.mxu0 0
        %1257 = vmatpush2.bf16.msra.mxu0 0
        %1258 = vmatprep.subr.bf16.mxu0 0
        %1259 = vmatpush2.bf16.msra.mxu0 0
        %1260 = vmatprep.subr.bf16.mxu0 0
        %1261 = vmatpush2.bf16.msra.mxu0 0
        %1262 = vmatprep.subr.bf16.mxu0 0
        %1263 = vmatpush2.bf16.msra.mxu0 0
        %1264 = vmatprep.subr.bf16.mxu0 0
        %1265 = vmatpush2.bf16.msra.mxu0 0
        %1266 = vmatprep.subr.bf16.mxu0 0
        %1267 = vmatpush2.bf16.msra.mxu0 0
        %1268 = vmatprep.subr.bf16.mxu0 0
        %1269 = vmatpush2.bf16.msra.mxu0 0
        %1270 = vmatprep.mubr.bf16.mxu0 0
        %1271 = vmatmul.mubr.bf16.gmra.mxu0 %v1236
        %v1272 = vpop.f32.mrf.mxu0
        %v1273 = vadd.f32 %v1221, %v1272
        %v1274 = vpop.f32.mrf.mxu0
        %v1275 = vpop.f32.mrf.mxu0
        %v1276 = vadd.f32 %v1221, %v1275
        %v1277 = vpop.f32.mrf.mxu0
        %1278 = vdwg.mxu0
        %v1279 = vmul.f32 %v1273, %v1273
        %v1280 = vmul.f32 %v1276, %v1276
        %v1281 = vmul.f32 %v1273, %v1279
        %v1282 = vmul.f32 %v1276, %v1280
        %v1283 = vmul.f32 %v1281, 0.044715
        %v1284 = vmul.f32 %v1282, 0.044715
        %v1285 = vadd.f32 %v1273, %v1283
        %v1286 = vadd.f32 %v1276, %v1284
        %v1287 = vmul.f32 %v1285, 0.7978846
        %v1288 = vmul.f32 %v1286, 0.7978846
        %v1289 = vtanh.pop %v1287
        %v1290 = vtanh.pop %v1288
        %v1291 = vadd.f32 %v1289, 1.0
        %v1292 = vadd.f32 %v1290, 1.0
        %v1293 = vmul.f32 %v1291, 0.5
        %v1294 = vmul.f32 %v1292, 0.5
        %v1295 = vmul.f32 %v1273, %v1293
        %v1296 = vmul.f32 %v1276, %v1294
        %v1297 = vpack.c.bf16 %v1296, %v1295
        %v1298 = vld [vmem:[%s428] sm:$0xf]
        %v1299 = vld [vmem:[%s428 + $0x4] sm:$0xf]
        %v1300 = vld [vmem:[%s428 + $0x8] sm:$0xf]
        %v1301 = vld [vmem:[%s428 + $0xc] sm:$0xf]
        %v1302 = vld [vmem:[%s428 + $0x10] sm:$0xf]
        %v1303 = vld [vmem:[%s428 + $0x14] sm:$0xf]
        %v1304 = vld [vmem:[%s428 + $0x18] sm:$0xf]
        %v1305 = vld [vmem:[%s428 + $0x1c] sm:$0xf]
        %v1306 = vlaneseq
        %v1307 = vshrl.u32 %v1306, 7
        %v1308 = vsub.s32 3, %v1307
        %v1309 = vrot.slane %v1104, %v1308
        %v1318 = vunpack.c.l.b16 %v1298
        %v1319 = vunpack.c.l.b16 %v1299
        %v1320 = vunpack.c.l.b16 %v1300
        %v1321 = vunpack.c.l.b16 %v1301
        %v1322 = vunpack.c.l.b16 %v1302
        %v1323 = vunpack.c.l.b16 %v1303
        %v1324 = vunpack.c.l.b16 %v1304
        %v1325 = vunpack.c.l.b16 %v1305
        %v1326 = vpack.c.b16 %v1319, %v1318
        %v1327 = vpack.c.b16 %v1321, %v1320
        %v1328 = vpack.c.b16 %v1323, %v1322
        %v1329 = vpack.c.b16 %v1325, %v1324
        %vm1334 = vcmask 523264
        %v1336 = vsel %vm1334, %v1297, 0
        %1338 = vmatprep.subr.bf16.mxu0 0
        %1339 = vmatpush1.bf16.msra.mxu0 0
        %1340 = vmatprep.subr.bf16.mxu0 0
        %1341 = vmatpush1.bf16.msra.mxu0 0
        %1342 = vmatprep.subr.bf16.mxu0 0
        %1343 = vmatpush1.bf16.msra.mxu0 0
        %1344 = vmatprep.subr.bf16.mxu0 0
        %1345 = vmatpush1.bf16.msra.mxu0 0
        %1346 = vmatprep.subr.bf16.mxu0 0
        %1347 = vmatpush1.bf16.msra.mxu0 %v1329
        %1348 = vmatprep.subr.bf16.mxu0 0
        %1349 = vmatpush1.bf16.msra.mxu0 %v1328
        %1350 = vmatprep.subr.bf16.mxu0 0
        %1351 = vmatpush1.bf16.msra.mxu0 %v1327
        %1352 = vmatprep.subr.bf16.mxu0 0
        %1353 = vmatpush1.bf16.msra.mxu0 %v1326
        %1354 = vmatprep.subr.bf16.mxu0 0
        %1355 = vmatpush2.bf16.msra.mxu0 0
        %1356 = vmatprep.subr.bf16.mxu0 0
        %1357 = vmatpush2.bf16.msra.mxu0 0
        %1358 = vmatprep.subr.bf16.mxu0 0
        %1359 = vmatpush2.bf16.msra.mxu0 0
        %1360 = vmatprep.subr.bf16.mxu0 0
        %1361 = vmatpush2.bf16.msra.mxu0 0
        %1362 = vmatprep.subr.bf16.mxu0 0
        %1363 = vmatpush2.bf16.msra.mxu0 0
        %1364 = vmatprep.subr.bf16.mxu0 0
        %1365 = vmatpush2.bf16.msra.mxu0 0
        %1366 = vmatprep.subr.bf16.mxu0 0
        %1367 = vmatpush2.bf16.msra.mxu0 0
        %1368 = vmatprep.subr.bf16.mxu0 0
        %1369 = vmatpush2.bf16.msra.mxu0 0
        %1370 = vmatprep.mubr.bf16.mxu0 0
        %1371 = vmatmul.mubr.bf16.gmra.mxu0 %v1336
        %v1372 = vpop.f32.mrf.mxu0
        %v1373 = vadd.f32 %v1309, %v1372
        %v1374 = vpop.f32.mrf.mxu0
        %v1375 = vpop.f32.mrf.mxu0
        %v1376 = vadd.f32 %v1309, %v1375
        %v1377 = vpop.f32.mrf.mxu0
        %1378 = vdwg.mxu0
        %v1379 = vadd.f32 %v1209, %v1373
        %v1380 = vadd.f32 %v1210, %v1376
        %v1381 = vsel %vm570, %v1379, 0.0
        %1382 = vadd.xlane.f32.xlu0 %v1381
        %v1383 = vpop.xlane.xlu0 %1382
        %v1384 = vsel %vm570, %v1380, 0.0
        %1385 = vadd.xlane.f32.xlu0 %v1384
        %v1386 = vpop.xlane.xlu0 %1385
        %v1387 = vmul.f32 %v1383, %v1178
        %v1388 = vmul.f32 %v1386, %v1178
        %v1389 = vsub.f32 %v1379, %v1387
        %v1390 = vsub.f32 %v1380, %v1388
        %v1391 = vmul.f32 %v1389, %v1389
        %v1392 = vmul.f32 %v1390, %v1390
        %v1393 = vsel %vm570, %v1391, 0.0
        %1394 = vadd.xlane.f32.xlu0 %v1393
        %v1395 = vpop.xlane.xlu0 %1394
        %v1396 = vsel %vm570, %v1392, 0.0
        %1397 = vadd.xlane.f32.xlu0 %v1396
        %v1398 = vpop.xlane.xlu0 %1397
        %v1399 = vmul.f32 %v1395, %v1178
        %v1400 = vmul.f32 %v1398, %v1178
        %v1401 = vadd.f32 %v1399, 1e-12
        %v1402 = vadd.f32 %v1400, 1e-12
        %v1403 = vrsqrt.pop %v1401
        %v1404 = vrsqrt.pop %v1402
        %v1405 = vmul.f32 %v1389, %v1403
        %v1406 = vmul.f32 %v1390, %v1404
        %v1407 = vlaneseq
        %v1408 = vshrl.u32 %v1407, 7
        %v1409 = vsub.s32 4, %v1408
        %v1410 = vrot.slane %v1104, %v1409
        %v1411 = vmul.f32 %v1405, %v1410
        %v1412 = vmul.f32 %v1406, %v1410
        %v1413 = vlaneseq
        %v1414 = vshrl.u32 %v1413, 7
        %v1415 = vsub.s32 5, %v1414
        %v1416 = vrot.slane %v1104, %v1415
        %v1417 = vadd.f32 %v1411, %v1416
        %v1418 = vadd.f32 %v1412, %v1416
        %v1419 = vpack.c.bf16 %v1418, %v1417
        %v1421 = vunpack.c.l.b16 %v1419
        %v1422 = vunpack.c.h.b16 %v1419
        %v1423 = vpack.c.b16 %v1421, %v1421
        %v1424 = vpack.c.b16 %v1422, %v1422
        %vm1427 = vcmask 257024
        %1428 = vst.msk [vmem:[#allocation2] sm:$0xf] %vm1427, %v1423
        %1429 = vst.msk [vmem:[#allocation2 + $0x4] sm:$0xf] %vm1427, %v1424
        %p1430 = scmp.eq.s32.totalorder %s26, 1
        // Predicated region
        $region96: #{bert_class_forward.1} parent=55 // pred_check
          %p1431 = pneg %p1430
        $region97: #{bert_class_forward.1} parent=55 // pred_check_branch
          %1433 = sbr.rel (%p1431) target = $region99
        $region98: #{bert_class_forward.1} parent=55 // pred_region
          $region100: #{bert_class_forward.1} parent=98
            #allocation7 [shape = 'u8[8192]{0}', space=vmem, size = 0x2000, scoped, tag = 'scoped memory for bert_class_forward.1']
            #allocation8 [shape = 'u8[512]{0}', space=vmem, size = 0x400, scoped, tag = 'scoped memory for bert_class_forward.1']
            #allocation9 [shape = 'u8[8192]{0}', space=vmem, size = 0x2000, scoped, tag = 'scoped memory for bert_class_forward.1']
            #allocation10 [shape = 'u8[512]{0}', space=vmem, size = 0x400, scoped, tag = 'scoped memory for bert_class_forward.1']
            $region101: #{bert_class_forward.1} parent=100
              #allocation11 [shape = 's32[1]{0}', space=sflag, size = 0x4, scoped, tag = 'scoped memory for bert_class_forward.1']
              %p1435 = scmp.lt.u32.totalorder 16, 8
              %p1436 = pneg %p1435
              // Predicated region
              $region102: #{bert_class_forward.1} parent=101 // pred_check
                _
              $region103: #{bert_class_forward.1} parent=101 // pred_check_branch
                %1438 = sbr.rel (%p1435) target = $region105
              $region104: #{bert_class_forward.1} parent=101 // pred_region
                %s1454 = sand.u32 16, 7
                %p1455 = scmp.eq.s32.totalorder %s1454, 0
                // Predicated region
                $region117: #{bert_class_forward.1} parent=104 // pred_check
                  %p1456 = pneg %p1455
                $region118: #{bert_class_forward.1} parent=104 // pred_check_branch
                  %1458 = sbr.rel (%p1456) target = $region120
                $region119: #{bert_class_forward.1} parent=104 // pred_region
                  loop: start=0, step=1, limit=1
                  $region121: #{bert_class_forward.1} parent=119 // loop_pre_header
                    _
                  $region122: #{bert_class_forward.1} parent=119 // loop_header
                    %s1460 = sphi 0, %s1464
                    %p1461 = scmp.ge.s32.totalorder %s1460, 1
                    %s1465 = sphi %s10, %s10
                    %s1466 = sphi [#allocation7], [#allocation7]
                  $region123: #{bert_class_forward.1} parent=119 // loop_header_branch
                    %1463 = sbr.rel (%p1461) target = $region127
                  $region124: #{bert_class_forward.1} parent=119 // loop_body
                    %v1467 = vld [vmem:[%s1465] sm:$0xff]
                    %1468 = vst [vmem:[%s1466] sm:$0xff] %v1467
                    %v1469 = vld [vmem:[%s1465 + $0x8] sm:$0xff]
                    %1470 = vst [vmem:[%s1466 + $0x8] sm:$0xff] %v1469
                  $region125: #{bert_class_forward.1} parent=119 // loop_footer
                    %s1464 = sadd.s32 1, %s1460
                  $region126: #{bert_class_forward.1} parent=119 // loop_footer_branch
                    %1459 = sbr.rel target = $region122
                  $region127: #{bert_class_forward.1} parent=119 // loop_exit
                    _
                $region120: #{bert_class_forward.1} parent=104 // pred_fallthru
                  _
                %p1471 = pneg %p1455
                // Predicated region
                $region128: #{bert_class_forward.1} parent=104 // pred_check
                  _
                $region129: #{bert_class_forward.1} parent=104 // pred_check_branch
                  %1473 = sbr.rel (%p1455) target = $region131
                $region130: #{bert_class_forward.1} parent=104 // pred_region
                  %s1474 = sand.u32 16, 7
                $region131: #{bert_class_forward.1} parent=104 // pred_fallthru
                  _
              $region105: #{bert_class_forward.1} parent=101 // pred_fallthru
                _
              // Predicated region
              $region106: #{bert_class_forward.1} parent=101 // pred_check
                %p1439 = pneg %p1435
              $region107: #{bert_class_forward.1} parent=101 // pred_check_branch
                %1441 = sbr.rel (%p1439) target = $region109
              $region108: #{bert_class_forward.1} parent=101 // pred_region
                %s1442 = sshll.u32 1, 16
                %s1443 = ssub.s32 %s1442, 1
                loop: start=0, step=1, limit=1
                $region110: #{bert_class_forward.1} parent=108 // loop_pre_header
                  _
                $region111: #{bert_class_forward.1} parent=108 // loop_header
                  %s1445 = sphi 0, %s1449
                  %p1446 = scmp.ge.s32.totalorder %s1445, 1
                  %s1450 = sphi %s10, %s10
                  %s1451 = sphi [#allocation7], [#allocation7]
                $region112: #{bert_class_forward.1} parent=108 // loop_header_branch
                  %1448 = sbr.rel (%p1446) target = $region116
                $region113: #{bert_class_forward.1} parent=108 // loop_body
                  %v1452 = vld [vmem:[%s1450] sm:%s1443]
                  %1453 = vst [vmem:[%s1451] sm:%s1443] %v1452
                $region114: #{bert_class_forward.1} parent=108 // loop_footer
                  %s1449 = sadd.s32 1, %s1445
                $region115: #{bert_class_forward.1} parent=108 // loop_footer_branch
                  %1444 = sbr.rel target = $region111
                $region116: #{bert_class_forward.1} parent=108 // loop_exit
                  _
              $region109: #{bert_class_forward.1} parent=101 // pred_fallthru
                _
              // Predicated region
              $region132: #{bert_class_forward.1} parent=101 // pred_check
                _
              $region133: #{bert_class_forward.1} parent=101 // pred_check_branch
                %1477 = sbr.rel (0) target = $region135
              $region134: #{bert_class_forward.1} parent=101 // pred_region
                %1478 = vsyncadd [#allocation11], 256
              $region135: #{bert_class_forward.1} parent=101 // pred_fallthru
                _
              %s1479 = smul.u32 4, 4
              %s1480 = smul.u32 %s1479, 1
              %s1481 = sshll.u32 %s1480, 4
              %1482 = dma.done [#allocation11], %s1481
            $region136: #{bert_class_forward.1} parent=100
              #allocation13 [shape = 's32[1]{0}', space=sflag, size = 0x4, scoped, tag = 'scoped memory for bert_class_forward.1']
              %p1484 = scmp.lt.u32.totalorder 1, 8
              %p1485 = pneg %p1484
              // Predicated region
              $region137: #{bert_class_forward.1} parent=136 // pred_check
                _
              $region138: #{bert_class_forward.1} parent=136 // pred_check_branch
                %1487 = sbr.rel (%p1484) target = $region140
              $region139: #{bert_class_forward.1} parent=136 // pred_region
                %s1503 = sand.u32 1, 7
                %p1504 = scmp.eq.s32.totalorder %s1503, 0
                %p1505 = pneg %p1504
                // Predicated region
                $region152: #{bert_class_forward.1} parent=139 // pred_check
                  _
                $region153: #{bert_class_forward.1} parent=139 // pred_check_branch
                  %1507 = sbr.rel (%p1504) target = $region155
                $region154: #{bert_class_forward.1} parent=139 // pred_region
                  %s1508 = sand.u32 1, 7
                  %s1509 = ssub.s32 1, %s1508
                  %s1510 = scalar_lea.vmem %s11, %s1509
                  %s1511 = ssub.s32 1, %s1508
                  %s1512 = scalar_lea.vmem [#allocation8], %s1511
                  %s1513 = sshll.u32 1, %s1508
                  %s1514 = ssub.s32 %s1513, 1
                  loop: start=0, step=1, limit=1
                  $region156: #{bert_class_forward.1} parent=154 // loop_pre_header
                    _
                  $region157: #{bert_class_forward.1} parent=154 // loop_header
                    %s1516 = sphi 0, %s1520
                    %p1517 = scmp.ge.s32.totalorder %s1516, 1
                    %s1521 = sphi %s1510, %s1510
                    %s1522 = sphi %s1512, %s1512
                  $region158: #{bert_class_forward.1} parent=154 // loop_header_branch
                    %1519 = sbr.rel (%p1517) target = $region162
                  $region159: #{bert_class_forward.1} parent=154 // loop_body
                    %v1523 = vld [vmem:[%s1521] sm:%s1514]
                    %1524 = vst [vmem:[%s1522] sm:%s1514] %v1523
                  $region160: #{bert_class_forward.1} parent=154 // loop_footer
                    %s1520 = sadd.s32 1, %s1516
                  $region161: #{bert_class_forward.1} parent=154 // loop_footer_branch
                    %1515 = sbr.rel target = $region157
                  $region162: #{bert_class_forward.1} parent=154 // loop_exit
                    _
                $region155: #{bert_class_forward.1} parent=139 // pred_fallthru
                  _
              $region140: #{bert_class_forward.1} parent=136 // pred_fallthru
                _
              // Predicated region
              $region141: #{bert_class_forward.1} parent=136 // pred_check
                %p1488 = pneg %p1484
              $region142: #{bert_class_forward.1} parent=136 // pred_check_branch
                %1490 = sbr.rel (%p1488) target = $region144
              $region143: #{bert_class_forward.1} parent=136 // pred_region
                %s1491 = sshll.u32 1, 1
                %s1492 = ssub.s32 %s1491, 1
                loop: start=0, step=1, limit=1
                $region145: #{bert_class_forward.1} parent=143 // loop_pre_header
                  _
                $region146: #{bert_class_forward.1} parent=143 // loop_header
                  %s1494 = sphi 0, %s1498
                  %p1495 = scmp.ge.s32.totalorder %s1494, 1
                  %s1499 = sphi %s11, %s11
                  %s1500 = sphi [#allocation8], [#allocation8]
                $region147: #{bert_class_forward.1} parent=143 // loop_header_branch
                  %1497 = sbr.rel (%p1495) target = $region151
                $region148: #{bert_class_forward.1} parent=143 // loop_body
                  %v1501 = vld [vmem:[%s1499] sm:%s1492]
                  %1502 = vst [vmem:[%s1500] sm:%s1492] %v1501
                $region149: #{bert_class_forward.1} parent=143 // loop_footer
                  %s1498 = sadd.s32 1, %s1494
                $region150: #{bert_class_forward.1} parent=143 // loop_footer_branch
                  %1493 = sbr.rel target = $region146
                $region151: #{bert_class_forward.1} parent=143 // loop_exit
                  _
              $region144: #{bert_class_forward.1} parent=136 // pred_fallthru
                _
              // Predicated region
              $region163: #{bert_class_forward.1} parent=136 // pred_check
                _
              $region164: #{bert_class_forward.1} parent=136 // pred_check_branch
                %1527 = sbr.rel (0) target = $region166
              $region165: #{bert_class_forward.1} parent=136 // pred_region
                %1528 = vsyncadd [#allocation13], 16
              $region166: #{bert_class_forward.1} parent=136 // pred_fallthru
                _
              %s1529 = smul.u32 1, 1
              %s1530 = sshll.u32 %s1529, 4
              %1531 = dma.done [#allocation13], %s1530
            $region167: #{bert_class_forward.1} parent=100
              #allocation15 [shape = 's32[1]{0}', space=sflag, size = 0x4, scoped, tag = 'scoped memory for bert_class_forward.1']
              %p1533 = scmp.lt.u32.totalorder 16, 8
              %p1534 = pneg %p1533
              // Predicated region
              $region168: #{bert_class_forward.1} parent=167 // pred_check
                _
              $region169: #{bert_class_forward.1} parent=167 // pred_check_branch
                %1536 = sbr.rel (%p1533) target = $region171
              $region170: #{bert_class_forward.1} parent=167 // pred_region
                %s1552 = sand.u32 16, 7
                %p1553 = scmp.eq.s32.totalorder %s1552, 0
                // Predicated region
                $region183: #{bert_class_forward.1} parent=170 // pred_check
                  %p1554 = pneg %p1553
                $region184: #{bert_class_forward.1} parent=170 // pred_check_branch
                  %1556 = sbr.rel (%p1554) target = $region186
                $region185: #{bert_class_forward.1} parent=170 // pred_region
                  loop: start=0, step=1, limit=1
                  $region187: #{bert_class_forward.1} parent=185 // loop_pre_header
                    _
                  $region188: #{bert_class_forward.1} parent=185 // loop_header
                    %s1558 = sphi 0, %s1562
                    %p1559 = scmp.ge.s32.totalorder %s1558, 1
                    %s1563 = sphi %s12, %s12
                    %s1564 = sphi [#allocation9], [#allocation9]
                  $region189: #{bert_class_forward.1} parent=185 // loop_header_branch
                    %1561 = sbr.rel (%p1559) target = $region193
                  $region190: #{bert_class_forward.1} parent=185 // loop_body
                    %v1565 = vld [vmem:[%s1563] sm:$0xff]
                    %1566 = vst [vmem:[%s1564] sm:$0xff] %v1565
                    %v1567 = vld [vmem:[%s1563 + $0x8] sm:$0xff]
                    %1568 = vst [vmem:[%s1564 + $0x8] sm:$0xff] %v1567
                  $region191: #{bert_class_forward.1} parent=185 // loop_footer
                    %s1562 = sadd.s32 1, %s1558
                  $region192: #{bert_class_forward.1} parent=185 // loop_footer_branch
                    %1557 = sbr.rel target = $region188
                  $region193: #{bert_class_forward.1} parent=185 // loop_exit
                    _
                $region186: #{bert_class_forward.1} parent=170 // pred_fallthru
                  _
                %p1569 = pneg %p1553
                // Predicated region
                $region194: #{bert_class_forward.1} parent=170 // pred_check
                  _
                $region195: #{bert_class_forward.1} parent=170 // pred_check_branch
                  %1571 = sbr.rel (%p1553) target = $region197
                $region196: #{bert_class_forward.1} parent=170 // pred_region
                  %s1572 = sand.u32 16, 7
                $region197: #{bert_class_forward.1} parent=170 // pred_fallthru
                  _
              $region171: #{bert_class_forward.1} parent=167 // pred_fallthru
                _
              // Predicated region
              $region172: #{bert_class_forward.1} parent=167 // pred_check
                %p1537 = pneg %p1533
              $region173: #{bert_class_forward.1} parent=167 // pred_check_branch
                %1539 = sbr.rel (%p1537) target = $region175
              $region174: #{bert_class_forward.1} parent=167 // pred_region
                %s1540 = sshll.u32 1, 16
                %s1541 = ssub.s32 %s1540, 1
                loop: start=0, step=1, limit=1
                $region176: #{bert_class_forward.1} parent=174 // loop_pre_header
                  _
                $region177: #{bert_class_forward.1} parent=174 // loop_header
                  %s1543 = sphi 0, %s1547
                  %p1544 = scmp.ge.s32.totalorder %s1543, 1
                  %s1548 = sphi %s12, %s12
                  %s1549 = sphi [#allocation9], [#allocation9]
                $region178: #{bert_class_forward.1} parent=174 // loop_header_branch
                  %1546 = sbr.rel (%p1544) target = $region182
                $region179: #{bert_class_forward.1} parent=174 // loop_body
                  %v1550 = vld [vmem:[%s1548] sm:%s1541]
                  %1551 = vst [vmem:[%s1549] sm:%s1541] %v1550
                $region180: #{bert_class_forward.1} parent=174 // loop_footer
                  %s1547 = sadd.s32 1, %s1543
                $region181: #{bert_class_forward.1} parent=174 // loop_footer_branch
                  %1542 = sbr.rel target = $region177
                $region182: #{bert_class_forward.1} parent=174 // loop_exit
                  _
              $region175: #{bert_class_forward.1} parent=167 // pred_fallthru
                _
              // Predicated region
              $region198: #{bert_class_forward.1} parent=167 // pred_check
                _
              $region199: #{bert_class_forward.1} parent=167 // pred_check_branch
                %1575 = sbr.rel (0) target = $region201
              $region200: #{bert_class_forward.1} parent=167 // pred_region
                %1576 = vsyncadd [#allocation15], 256
              $region201: #{bert_class_forward.1} parent=167 // pred_fallthru
                _
              %s1577 = smul.u32 4, 4
              %s1578 = smul.u32 %s1577, 1
              %s1579 = sshll.u32 %s1578, 4
              %1580 = dma.done [#allocation15], %s1579
            $region202: #{bert_class_forward.1} parent=100
              #allocation17 [shape = 's32[1]{0}', space=sflag, size = 0x4, scoped, tag = 'scoped memory for bert_class_forward.1']
              %p1582 = scmp.lt.u32.totalorder 1, 8
              %p1583 = pneg %p1582
              // Predicated region
              $region203: #{bert_class_forward.1} parent=202 // pred_check
                _
              $region204: #{bert_class_forward.1} parent=202 // pred_check_branch
                %1585 = sbr.rel (%p1582) target = $region206
              $region205: #{bert_class_forward.1} parent=202 // pred_region
                %s1601 = sand.u32 1, 7
                %p1602 = scmp.eq.s32.totalorder %s1601, 0
                %p1603 = pneg %p1602
                // Predicated region
                $region218: #{bert_class_forward.1} parent=205 // pred_check
                  _
                $region219: #{bert_class_forward.1} parent=205 // pred_check_branch
                  %1605 = sbr.rel (%p1602) target = $region221
                $region220: #{bert_class_forward.1} parent=205 // pred_region
                  %s1606 = sand.u32 1, 7
                  %s1607 = ssub.s32 1, %s1606
                  %s1608 = scalar_lea.vmem %s13, %s1607
                  %s1609 = ssub.s32 1, %s1606
                  %s1610 = scalar_lea.vmem [#allocation10], %s1609
                  %s1611 = sshll.u32 1, %s1606
                  %s1612 = ssub.s32 %s1611, 1
                  loop: start=0, step=1, limit=1
                  $region222: #{bert_class_forward.1} parent=220 // loop_pre_header
                    _
                  $region223: #{bert_class_forward.1} parent=220 // loop_header
                    %s1614 = sphi 0, %s1618
                    %p1615 = scmp.ge.s32.totalorder %s1614, 1
                    %s1619 = sphi %s1608, %s1608
                    %s1620 = sphi %s1610, %s1610
                  $region224: #{bert_class_forward.1} parent=220 // loop_header_branch
                    %1617 = sbr.rel (%p1615) target = $region228
                  $region225: #{bert_class_forward.1} parent=220 // loop_body
                    %v1621 = vld [vmem:[%s1619] sm:%s1612]
                    %1622 = vst [vmem:[%s1620] sm:%s1612] %v1621
                  $region226: #{bert_class_forward.1} parent=220 // loop_footer
                    %s1618 = sadd.s32 1, %s1614
                  $region227: #{bert_class_forward.1} parent=220 // loop_footer_branch
                    %1613 = sbr.rel target = $region223
                  $region228: #{bert_class_forward.1} parent=220 // loop_exit
                    _
                $region221: #{bert_class_forward.1} parent=205 // pred_fallthru
                  _
              $region206: #{bert_class_forward.1} parent=202 // pred_fallthru
                _
              // Predicated region
              $region207: #{bert_class_forward.1} parent=202 // pred_check
                %p1586 = pneg %p1582
              $region208: #{bert_class_forward.1} parent=202 // pred_check_branch
                %1588 = sbr.rel (%p1586) target = $region210
              $region209: #{bert_class_forward.1} parent=202 // pred_region
                %s1589 = sshll.u32 1, 1
                %s1590 = ssub.s32 %s1589, 1
                loop: start=0, step=1, limit=1
                $region211: #{bert_class_forward.1} parent=209 // loop_pre_header
                  _
                $region212: #{bert_class_forward.1} parent=209 // loop_header
                  %s1592 = sphi 0, %s1596
                  %p1593 = scmp.ge.s32.totalorder %s1592, 1
                  %s1597 = sphi %s13, %s13
                  %s1598 = sphi [#allocation10], [#allocation10]
                $region213: #{bert_class_forward.1} parent=209 // loop_header_branch
                  %1595 = sbr.rel (%p1593) target = $region217
                $region214: #{bert_class_forward.1} parent=209 // loop_body
                  %v1599 = vld [vmem:[%s1597] sm:%s1590]
                  %1600 = vst [vmem:[%s1598] sm:%s1590] %v1599
                $region215: #{bert_class_forward.1} parent=209 // loop_footer
                  %s1596 = sadd.s32 1, %s1592
                $region216: #{bert_class_forward.1} parent=209 // loop_footer_branch
                  %1591 = sbr.rel target = $region212
                $region217: #{bert_class_forward.1} parent=209 // loop_exit
                  _
              $region210: #{bert_class_forward.1} parent=202 // pred_fallthru
                _
              // Predicated region
              $region229: #{bert_class_forward.1} parent=202 // pred_check
                _
              $region230: #{bert_class_forward.1} parent=202 // pred_check_branch
                %1625 = sbr.rel (0) target = $region232
              $region231: #{bert_class_forward.1} parent=202 // pred_region
                %1626 = vsyncadd [#allocation17], 16
              $region232: #{bert_class_forward.1} parent=202 // pred_fallthru
                _
              %s1627 = smul.u32 1, 1
              %s1628 = sshll.u32 %s1627, 4
              %1629 = dma.done [#allocation17], %s1628
            %v1630 = vpack.c.bf16 %v1417, %v1417
            %v1631 = vpack.c.bf16 %v1418, %v1418
            %v1632 = vld [vmem:[#allocation7] sm:$0xff]
            %v1633 = vld [vmem:[#allocation7 + $0x8] sm:$0xff]
            %v1634 = vld [vmem:[#allocation8] sm:$0x1]
            %v1636 = vlaneseq
            %v1637 = vshrl.u32 %v1636, 7
            %v1638 = vsub.s32 0, %v1637
            %v1639 = vrot.slane %v1634, %v1638
            %v1643 = vunpack.c.l.b16 %v1630
            %v1644 = vunpack.c.l.b16 %v1631
            %v1645 = vrot.slane %v1644, 7
            %vm1646 = vcmask 1041409
            %v1647 = vsel %vm1646, %v1645, %v1643
            %v1648 = vpack.c.b16 %v1647, %v1647
            %v1650 = vsel %vm570, %v1648, 0
            %1652 = vmatprep.subr.bf16.mxu0 0
            %1653 = vmatpush1.bf16.msra.mxu0 0
            %1654 = vmatprep.subr.bf16.mxu0 0
            %1655 = vmatpush1.bf16.msra.mxu0 0
            %1656 = vmatprep.subr.bf16.mxu0 0
            %1657 = vmatpush1.bf16.msra.mxu0 0
            %1658 = vmatprep.subr.bf16.mxu0 0
            %1659 = vmatpush1.bf16.msra.mxu0 0
            %1660 = vmatprep.subr.bf16.mxu0 0
            %1661 = vmatpush1.bf16.msra.mxu0 0
            %1662 = vmatprep.subr.bf16.mxu0 0
            %1663 = vmatpush1.bf16.msra.mxu0 0
            %1664 = vmatprep.subr.bf16.mxu0 0
            %1665 = vmatpush1.bf16.msra.mxu0 %v1633
            %1666 = vmatprep.subr.bf16.mxu0 0
            %1667 = vmatpush1.bf16.msra.mxu0 %v1632
            %1668 = vmatprep.subr.bf16.mxu0 0
            %1669 = vmatpush2.bf16.msra.mxu0 0
            %1670 = vmatprep.subr.bf16.mxu0 0
            %1671 = vmatpush2.bf16.msra.mxu0 0
            %1672 = vmatprep.subr.bf16.mxu0 0
            %1673 = vmatpush2.bf16.msra.mxu0 0
            %1674 = vmatprep.subr.bf16.mxu0 0
            %1675 = vmatpush2.bf16.msra.mxu0 0
            %1676 = vmatprep.subr.bf16.mxu0 0
            %1677 = vmatpush2.bf16.msra.mxu0 0
            %1678 = vmatprep.subr.bf16.mxu0 0
            %1679 = vmatpush2.bf16.msra.mxu0 0
            %1680 = vmatprep.subr.bf16.mxu0 0
            %1681 = vmatpush2.bf16.msra.mxu0 0
            %1682 = vmatprep.subr.bf16.mxu0 0
            %1683 = vmatpush2.bf16.msra.mxu0 0
            %1684 = vmatprep.mubr.bf16.mxu0 0
            %1685 = vmatmul.mubr.bf16.gmra.mxu0 %v1650
            %v1686 = vpop.f32.mrf.mxu0
            %v1687 = vadd.f32 %v1639, %v1686
            %v1688 = vpop.f32.mrf.mxu0
            %v1689 = vpop.f32.mrf.mxu0
            %v1690 = vpop.f32.mrf.mxu0
            %1691 = vdwg.mxu0
            %v1692 = vtanh.pop %v1687
            %v1693 = vpack.c.bf16 %v1692, %v1692
            %v1694 = vld [vmem:[#allocation9] sm:$0xff]
            %v1695 = vld [vmem:[#allocation9 + $0x8] sm:$0xff]
            %v1696 = vld [vmem:[#allocation10] sm:$0x1]
            %v1698 = vlaneseq
            %v1699 = vshrl.u32 %v1698, 7
            %v1700 = vsub.s32 0, %v1699
            %v1701 = vrot.slane %v1696, %v1700
            %v1704 = vsel %vm570, %v1693, 0
            %1706 = vmatprep.subr.bf16.mxu0 0
            %1707 = vmatpush1.bf16.msra.mxu0 0
            %1708 = vmatprep.subr.bf16.mxu0 0
            %1709 = vmatpush1.bf16.msra.mxu0 0
            %1710 = vmatprep.subr.bf16.mxu0 0
            %1711 = vmatpush1.bf16.msra.mxu0 0
            %1712 = vmatprep.subr.bf16.mxu0 0
            %1713 = vmatpush1.bf16.msra.mxu0 0
            %1714 = vmatprep.subr.bf16.mxu0 0
            %1715 = vmatpush1.bf16.msra.mxu0 0
            %1716 = vmatprep.subr.bf16.mxu0 0
            %1717 = vmatpush1.bf16.msra.mxu0 0
            %1718 = vmatprep.subr.bf16.mxu0 0
            %1719 = vmatpush1.bf16.msra.mxu0 %v1695
            %1720 = vmatprep.subr.bf16.mxu0 0
            %1721 = vmatpush1.bf16.msra.mxu0 %v1694
            %1722 = vmatprep.subr.bf16.mxu0 0
            %1723 = vmatpush2.bf16.msra.mxu0 0
            %1724 = vmatprep.subr.bf16.mxu0 0
            %1725 = vmatpush2.bf16.msra.mxu0 0
            %1726 = vmatprep.subr.bf16.mxu0 0
            %1727 = vmatpush2.bf16.msra.mxu0 0
            %1728 = vmatprep.subr.bf16.mxu0 0
            %1729 = vmatpush2.bf16.msra.mxu0 0
            %1730 = vmatprep.subr.bf16.mxu0 0
            %1731 = vmatpush2.bf16.msra.mxu0 0
            %1732 = vmatprep.subr.bf16.mxu0 0
            %1733 = vmatpush2.bf16.msra.mxu0 0
            %1734 = vmatprep.subr.bf16.mxu0 0
            %1735 = vmatpush2.bf16.msra.mxu0 0
            %1736 = vmatprep.subr.bf16.mxu0 0
            %1737 = vmatpush2.bf16.msra.mxu0 0
            %1738 = vmatprep.mubr.bf16.mxu0 0
            %1739 = vmatmul.mubr.bf16.gmra.mxu0 %v1704
            %v1740 = vpop.f32.mrf.mxu0
            %v1741 = vadd.f32 %v1701, %v1740
            %v1742 = vpop.f32.mrf.mxu0
            %v1743 = vpop.f32.mrf.mxu0
            %v1744 = vpop.f32.mrf.mxu0
            %1745 = vdwg.mxu0
            %1746 = vst [vmem:[#allocation3] sm:$0x3] %v1741
        $region99: #{bert_class_forward.1} parent=55 // pred_fallthru
          _
        // Predicated region
        $region233: #{bert_class_forward.1} parent=55 // pred_check
          %p1747 = pneg %p263
        $region234: #{bert_class_forward.1} parent=55 // pred_check_branch
          %1749 = sbr.rel (%p1747) target = $region236
        $region235: #{bert_class_forward.1} parent=55 // pred_region
          %s1751 = ssub.s32 32, 32
          %1752 = vsyncadd [#allocation4], %s1751
          %s1754 = sshll.u32 [#allocation3], 4
          %s1755 = int_to_ptr.vmem [resolvable:$true] %s1754
          %1757 = dma.vmem_to_hbm [thread:$0]  %s1755, 32, %s14, [#allocation4]
        $region236: #{bert_class_forward.1} parent=55 // pred_fallthru
          _
        // Predicated region
        $region237: #{bert_class_forward.1} parent=55 // pred_check
          %p1758 = pneg %p263
        $region238: #{bert_class_forward.1} parent=55 // pred_check_branch
          %1760 = sbr.rel (%p1758) target = $region240
        $region239: #{bert_class_forward.1} parent=55 // pred_region
          %1761 = dma.done [#allocation4], 32
        $region240: #{bert_class_forward.1} parent=55 // pred_fallthru
          _
      $region56: #{bert_class_forward.1} parent=5 // pred_fallthru
        _
      %p1762 = scmp.le.s32.totalorder 2, %s21
      // Predicated region
      $region241: #{bert_class_forward.1} parent=5 // pred_check
        %p1763 = pneg %p1762
      $region242: #{bert_class_forward.1} parent=5 // pred_check_branch
        %1765 = sbr.rel (%p1763) target = $region244
      $region243: #{bert_class_forward.1} parent=5 // pred_region
        %s1766 = ssub.s32 %s21, 2
      $region244: #{bert_class_forward.1} parent=5 // pred_fallthru
        _
    $region6: #{bert_class_forward.1} parent=1 // loop_footer
      %s25 = sadd.s32 1, %s21
    $region7: #{bert_class_forward.1} parent=1 // loop_footer_branch
      %20 = sbr.rel target = $region3
    $region8: #{bert_class_forward.1} parent=1 // loop_exit
      _
    %1767 = vsyncpa [#allocation4], 1
    %s1768 = scalar_lea.sflag [#allocation4], 1
    %1769 = vsyncpa %s1768, 1

</llo_original>
